<compile_context>
chip_gen: v7x
topology: tpu7x:2x2x1
jax: 0.10.0
libtpu: 0.0.40
codegen_flags: <defaults>
</compile_context>

<pallas_src>
import functools

import jax
import jax.numpy as jnp
import numpy as np
from jax.experimental import pallas as pl
from jax.experimental.pallas import tpu as pltpu


# ---------------------------------------------------------------------------
# Pallas kernel: fused bi-LSTM recurrence + attention + output head in VMEM.
# ---------------------------------------------------------------------------
def lstm_attn_kernel(
    xcat_ref,    # [T*B, 2E]  row s*B+b = [emb(b, s) | emb(b, T-1-s)]
    mstep_ref,   # [T*B, 2H]  lanes 0:H = mask(b, s), lanes H:2H = mask(b, T-1-s)
    mbt_ref,     # [B, T]     validity mask, batch-major (softmax)
    wil_ref,     # [2E, 8H]   interleaved input->gate weights (fwd even / bwd odd blocks)
    whh_ref,     # [2H, 8H]   interleaved block-diagonal hidden->gate weights
    bil_ref,     # [1, 8H]    interleaved gate bias (b_ih + b_hh, both directions)
    w1_ref,      # [2H, H]    attention linear 1 weight (transposed)
    b1_ref,      # [1, H]     attention linear 1 bias
    w2_ref,      # [1, H]     attention linear 2 weight (torch shape, no bias)
    wo_ref,      # [2H, C]    output linear weight (transposed)
    bo_ref,      # [1, C]     output linear bias
    logits_ref,  # [B, C]     output
    attn_ref,    # [B, T]     output (attention weights, batch-major)
    hseq_ref,    # scratch [B, T, 2H]  bi-LSTM hidden sequence
):
    B, T = mbt_ref.shape
    H2 = whh_ref.shape[0]          # 2H (combined fwd|bwd hidden width)
    H = H2 // 2

    # ---- Hoisted input projection: ONE MXU call covers both directions and
    # every timestep; bias folded in so the loop only does h @ W_hh. ----------
    gstep = (
        jnp.dot(xcat_ref[...], wil_ref[...], preferred_element_type=jnp.float32)
        + bil_ref[...]
    )  # [T*B, 8H], gate blocks already interleaved [i_f i_b|f_f f_b|g_f g_b|o_f o_b]

    whh = whh_ref[...]
    m_all = mstep_ref[...]         # [T*B, 2H]

    # ---- Combined fwd+bwd recurrence, fully unrolled (T small and static);
    # h/c carries live in vregs; ONE matmul + ONE elementwise pass per step. --
    h = jnp.zeros((B, H2), jnp.float32)   # [h_fwd | h_bwd]
    c = jnp.zeros((B, H2), jnp.float32)
    for s in range(T):
        g = gstep[s * B:(s + 1) * B, :] + jnp.dot(
            h, whh, preferred_element_type=jnp.float32)        # [B, 8H]
        m = m_all[s * B:(s + 1) * B, :]                         # [B, 2H]
        # TODO(synk): with production H, make H a multiple of 128 so these
        # gate slices are lane-aligned (no relayout on the serial chain).
        i_g = jax.nn.sigmoid(g[:, 0 * H2:1 * H2])
        f_g = jax.nn.sigmoid(g[:, 1 * H2:2 * H2])
        g_g = jnp.tanh(g[:, 2 * H2:3 * H2])
        o_g = jax.nn.sigmoid(g[:, 3 * H2:4 * H2])
        c_new = f_g * c + i_g * g_g
        h_new = o_g * jnp.tanh(c_new)
        h_out = m * h_new                       # exact 0 at padded positions
        h = h_out + (1.0 - m) * h               # carry state only where valid
        c = m * c_new + (1.0 - m) * c
        hseq_ref[:, s, 0:H] = h_out[:, 0:H]             # forward half @ t = s
        hseq_ref[:, T - 1 - s, H:H2] = h_out[:, H:H2]   # backward half @ t = T-1-s

    # ---- Attention (batch-major) + context + output projection -------------
    hidden = hseq_ref[...]                                     # [B, T, 2H]
    h2 = hidden.reshape(B * T, H2)
    a1 = jnp.tanh(
        jnp.dot(h2, w1_ref[...], preferred_element_type=jnp.float32)
        + b1_ref[...]
    )                                                          # [B*T, H]
    scores = jnp.sum(
        a1.reshape(B, T, H) * w2_ref[...][None, :, :], axis=-1
    )                                                          # [B, T]
    scores = jnp.where(mbt_ref[...] > 0.5, scores, -jnp.inf)
    s_max = jnp.max(scores, axis=-1, keepdims=True)
    p = jnp.exp(scores - s_max)
    attn = p / jnp.sum(p, axis=-1, keepdims=True)              # [B, T]
    attn_ref[...] = attn                                       # lane-dense out

    context = jnp.sum(attn[:, :, None] * hidden, axis=1)       # [B, 2H]
    logits_ref[...] = (
        jnp.dot(context, wo_ref[...], preferred_element_type=jnp.float32)
        + bo_ref[...]
    )


# ---------------------------------------------------------------------------
# Wrapper (host glue): embedding gather (time-major, fwd + time-reversed),
# interleaved weight packing, masks, pallas_call.
# ---------------------------------------------------------------------------
@functools.partial(jax.jit, static_argnames=("num_classes",))
def attention_lstm_forward(padded_tokens, lens, params, num_classes=2):
    B, T = padded_tokens.shape
    H = params["whh_f"].shape[0]
    E = params["wih_f"].shape[0]
    C = num_classes

    # Time-major gather; backward direction just re-reads the same embeddings
    # with the time axis reversed -> one [T*B, 2E] input, one in-kernel matmul.
    tok_tm = padded_tokens.T                                    # [T, B]
    x_fwd = params["emb"][tok_tm].astype(jnp.float32)           # [T, B, E]
    x_bwd = x_fwd[::-1]                                         # [T, B, E]
    xcat = jnp.concatenate([x_fwd, x_bwd], axis=-1).reshape(T * B, 2 * E)

    mask_bt = (jnp.arange(T)[None, :] < lens[:, None]).astype(jnp.float32)  # [B,T]
    m_f = mask_bt.T                                             # [T, B]
    m_b = m_f[::-1]                                             # [T, B]
    mstep = jnp.concatenate(
        [jnp.broadcast_to(m_f[:, :, None], (T, B, H)),
         jnp.broadcast_to(m_b[:, :, None], (T, B, H))],
        axis=-1,
    ).reshape(T * B, 2 * H)                                     # [T*B, 2H]

    # Interleaved gate packing: block 2k -> forward gate k, block 2k+1 ->
    # backward gate k (gate order i, f, g, o as in torch.nn.LSTM).
    w_il = jnp.zeros((2 * E, 8 * H), jnp.float32)
    whh_bd = jnp.zeros((2 * H, 8 * H), jnp.float32)
    b_il = jnp.zeros((1, 8 * H), jnp.float32)
    for k in range(4):
        fcol = slice(2 * k * H, (2 * k + 1) * H)
        bcol = slice((2 * k + 1) * H, (2 * k + 2) * H)
        gcol = slice(k * H, (k + 1) * H)
        w_il = w_il.at[:E, fcol].set(params["wih_f"][:, gcol])
        w_il = w_il.at[E:, bcol].set(params["wih_b"][:, gcol])
        whh_bd = whh_bd.at[:H, fcol].set(params["whh_f"][:, gcol])
        whh_bd = whh_bd.at[H:, bcol].set(params["whh_b"][:, gcol])
        b_il = b_il.at[:, fcol].set(params["b_f"][:, gcol])
        b_il = b_il.at[:, bcol].set(params["b_b"][:, gcol])

    vmem = pl.BlockSpec(memory_space=pltpu.MemorySpace.VMEM)

    logits, attn = pl.pallas_call(
        lstm_attn_kernel,
        out_shape=(
            jax.ShapeDtypeStruct((B, C), jnp.float32),
            jax.ShapeDtypeStruct((B, T), jnp.float32),
        ),
        in_specs=[vmem] * 11,
        out_specs=(vmem, vmem),
        scratch_shapes=[pltpu.VMEM((B, T, 2 * H), jnp.float32)],
        compiler_params=pltpu.CompilerParams(
            vmem_limit_bytes=32 * 1024 * 1024),
    )(
        xcat, mstep, mask_bt,
        w_il, whh_bd, b_il,
        params["w_attn1"], params["b_attn1"], params["w_attn2"],
        params["w_out"], params["b_out"],
    )
    return logits, attn


# ---------------------------------------------------------------------------
# Pure-JAX reference (same math, no Pallas) for verification.
# ---------------------------------------------------------------------------
def attention_lstm_reference(padded_tokens, lens, params):
    emb = params["emb"][padded_tokens]                   # [B, T, E]
    B, T, _ = emb.shape
    H = params["whh_f"].shape[0]
    mask = (jnp.arange(T)[None, :] < lens[:, None]).astype(jnp.float32)

    def run_dir(wih, whh, b, reverse):
        xs = jnp.transpose(emb, (1, 0, 2))
        ms = mask.T[:, :, None]
        if reverse:
            xs, ms = xs[::-1], ms[::-1]

        def step(carry, inp):
            h, c = carry
            x_t, m = inp
            gates = x_t @ wih + h @ whh + b
            i_g = jax.nn.sigmoid(gates[:, :H])
            f_g = jax.nn.sigmoid(gates[:, H:2 * H])
            g_g = jnp.tanh(gates[:, 2 * H:3 * H])
            o_g = jax.nn.sigmoid(gates[:, 3 * H:])
            c_new = f_g * c + i_g * g_g
            h_new = o_g * jnp.tanh(c_new)
            return (m * h_new + (1 - m) * h, m * c_new + (1 - m) * c), m * h_new

        init = (jnp.zeros((B, H), jnp.float32), jnp.zeros((B, H), jnp.float32))
        _, outs = jax.lax.scan(step, init, (xs, ms))
        if reverse:
            outs = outs[::-1]
        return jnp.transpose(outs, (1, 0, 2))

    hf = run_dir(params["wih_f"], params["whh_f"], params["b_f"], False)
    hb = run_dir(params["wih_b"], params["whh_b"], params["b_b"], True)
    hidden = jnp.concatenate([hf, hb], axis=-1)          # [B, T, 2H]
    a1 = jnp.tanh(hidden @ params["w_attn1"] + params["b_attn1"])
    scores = jnp.sum(a1 * params["w_attn2"][0][None, None, :], axis=-1)
    scores = jnp.where(mask > 0.5, scores, -jnp.inf)
    attn = jax.nn.softmax(scores, axis=-1)
    context = jnp.sum(attn[:, :, None] * hidden, axis=1)
    logits = context @ params["w_out"] + params["b_out"]
    return logits, attn


# ---------------------------------------------------------------------------
# Deterministic parameter init (shapes from the module's __init__).
# ---------------------------------------------------------------------------
def init_params(key, vocab_size, emb_size, hidden_size, num_classes):
    H, E, C = hidden_size, emb_size, num_classes
    ks = jax.random.split(key, 16)

    def u(k, shape, fan_in):
        s = 1.0 / np.sqrt(fan_in)
        return jax.random.uniform(k, shape, jnp.float32, -s, s)

    emb = jax.random.normal(ks[0], (vocab_size, E), jnp.float32) * 0.1
    emb = emb.at[1].set(0.0)  # padding_idx=1 row is zero, as in nn.Embedding

    params = dict(
        emb=emb,
        wih_f=u(ks[1], (E, 4 * H), H),
        whh_f=u(ks[2], (H, 4 * H), H),
        b_f=u(ks[3], (1, 4 * H), H) + u(ks[4], (1, 4 * H), H),   # b_ih + b_hh
        wih_b=u(ks[5], (E, 4 * H), H),
        whh_b=u(ks[6], (H, 4 * H), H),
        b_b=u(ks[7], (1, 4 * H), H) + u(ks[8], (1, 4 * H), H),
        w_attn1=u(ks[9], (2 * H, H), 2 * H),
        b_attn1=u(ks[10], (1, H), 2 * H),
        w_attn2=u(ks[11], (1, H), H),          # nn.Linear(H, 1, bias=False).weight
        w_out=u(ks[12], (2 * H, C), 2 * H),
        b_out=u(ks[13], (1, C), 2 * H),
    )
    return params


if __name__ == "__main__":
    key = jax.random.PRNGKey(0)
    k_tok1, k_tok2, k_param = jax.random.split(key, 3)

    # Small, module-consistent shapes.
    vocab_size, emb_size, hidden_size, num_classes = 50, 16, 32, 2
    B, T = 2, 8
    lens = jnp.array([8, 5], dtype=jnp.int32)   # must be >= 1 (as in PyTorch)

    # Variable-length token list (as the torch module expects), padded with 1.
    tok0 = jax.random.randint(k_tok1, (8,), 2, vocab_size, dtype=jnp.int32)
    tok1 = jax.random.randint(k_tok2, (5,), 2, vocab_size, dtype=jnp.int32)
    padded_tokens = jnp.full((B, T), 1, dtype=jnp.int32)
    padded_tokens = padded_tokens.at[0, :8].set(tok0)
    padded_tokens = padded_tokens.at[1, :5].set(tok1)

    params = init_params(k_param, vocab_size, emb_size, hidden_size, num_classes)

    logits, attn = attention_lstm_forward(
        padded_tokens, lens, params, num_classes=num_classes
    )
    logits = jax.block_until_ready(logits)
    attn = jax.block_until_ready(attn)

    ref_logits, ref_attn = attention_lstm_reference(padded_tokens, lens, params)
    np.testing.assert_allclose(np.asarray(logits), np.asarray(ref_logits),
                               rtol=1e-3, atol=1e-3)
    np.testing.assert_allclose(np.asarray(attn), np.asarray(ref_attn),
                               rtol=1e-3, atol=1e-3)

    print("KERNEL_OK")
</pallas_src>

<mosaic_0001>
module attributes {stable_mosaic.version = 11 : i64} {
  func.func @lstm_attn_kernel(%arg0: memref<16x32xf32, #tpu.memory_space<vmem>>, %arg1: memref<16x64xf32, #tpu.memory_space<vmem>>, %arg2: memref<2x8xf32, #tpu.memory_space<vmem>>, %arg3: memref<32x256xf32, #tpu.memory_space<vmem>>, %arg4: memref<64x256xf32, #tpu.memory_space<vmem>>, %arg5: memref<1x256xf32, #tpu.memory_space<vmem>>, %arg6: memref<64x32xf32, #tpu.memory_space<vmem>>, %arg7: memref<1x32xf32, #tpu.memory_space<vmem>>, %arg8: memref<1x32xf32, #tpu.memory_space<vmem>>, %arg9: memref<64x2xf32, #tpu.memory_space<vmem>>, %arg10: memref<1x2xf32, #tpu.memory_space<vmem>>, %arg11: memref<2x2xf32, #tpu.memory_space<vmem>>, %arg12: memref<2x8xf32, #tpu.memory_space<vmem>>, %arg13: memref<2x8x64xf32, #tpu.memory_space<vmem>>) attributes {dimension_semantics = [], scalar_prefetch = 0 : i64, scratch_operands = 1 : i64, tpu.core_type = #tpu.core_type<tc>} {
    %c0 = arith.constant 0 : index
    %c0_0 = arith.constant 0 : index
    %0 = vector.load %arg0[%c0, %c0_0] : memref<16x32xf32, #tpu.memory_space<vmem>>, vector<16x32xf32>
    %c0_1 = arith.constant 0 : index
    %c0_2 = arith.constant 0 : index
    %1 = vector.load %arg3[%c0_1, %c0_2] : memref<32x256xf32, #tpu.memory_space<vmem>>, vector<32x256xf32>
    %cst = arith.constant dense<0.000000e+00> : vector<16x256xf32>
    %2 = tpu.matmul %0, %1, %cst {dimension_numbers = #tpu.dot_dimension_numbers<[1], [0], [0], [1], [0, 0, 1, 1], [], []>} : vector<16x32xf32>, vector<32x256xf32>, vector<16x256xf32> -> vector<16x256xf32>
    %c0_3 = arith.constant 0 : index
    %c0_4 = arith.constant 0 : index
    %3 = vector.load %arg5[%c0_3, %c0_4] : memref<1x256xf32, #tpu.memory_space<vmem>>, vector<1x256xf32>
    %4 = vector.broadcast %3 : vector<1x256xf32> to vector<16x256xf32>
    %5 = arith.addf %2, %4 : vector<16x256xf32>
    %c0_5 = arith.constant 0 : index
    %c0_6 = arith.constant 0 : index
    %6 = vector.load %arg4[%c0_5, %c0_6] : memref<64x256xf32, #tpu.memory_space<vmem>>, vector<64x256xf32>
    %c0_7 = arith.constant 0 : index
    %c0_8 = arith.constant 0 : index
    %7 = vector.load %arg1[%c0_7, %c0_8] : memref<16x64xf32, #tpu.memory_space<vmem>>, vector<16x64xf32>
    %cst_9 = arith.constant 0.000000e+00 : f32
    %8 = vector.broadcast %cst_9 : f32 to vector<2x64xf32>
    %cst_10 = arith.constant 0.000000e+00 : f32
    %9 = vector.broadcast %cst_10 : f32 to vector<2x64xf32>
    %10 = vector.extract_strided_slice %5 {offsets = [0, 0], sizes = [2, 256], strides = [1, 1]} : vector<16x256xf32> to vector<2x256xf32>
    %cst_11 = arith.constant dense<0.000000e+00> : vector<2x256xf32>
    %11 = tpu.matmul %8, %6, %cst_11 {dimension_numbers = #tpu.dot_dimension_numbers<[1], [0], [0], [1], [0, 0, 1, 1], [], []>} : vector<2x64xf32>, vector<64x256xf32>, vector<2x256xf32> -> vector<2x256xf32>
    %12 = arith.addf %10, %11 : vector<2x256xf32>
    %13 = vector.extract_strided_slice %7 {offsets = [0, 0], sizes = [2, 64], strides = [1, 1]} : vector<16x64xf32> to vector<2x64xf32>
    %14 = vector.extract_strided_slice %12 {offsets = [0, 0], sizes = [2, 64], strides = [1, 1]} : vector<2x256xf32> to vector<2x64xf32>
    %15 = arith.negf %14 : vector<2x64xf32>
    %16 = math.exp %15 : vector<2x64xf32>
    %cst_12 = arith.constant 1.000000e+00 : f32
    %17 = vector.broadcast %cst_12 : f32 to vector<2x64xf32>
    %18 = arith.addf %17, %16 : vector<2x64xf32>
    %19 = arith.divf %17, %18 : vector<2x64xf32>
    %20 = vector.extract_strided_slice %12 {offsets = [0, 64], sizes = [2, 64], strides = [1, 1]} : vector<2x256xf32> to vector<2x64xf32>
    %21 = arith.negf %20 : vector<2x64xf32>
    %22 = math.exp %21 : vector<2x64xf32>
    %cst_13 = arith.constant 1.000000e+00 : f32
    %23 = vector.broadcast %cst_13 : f32 to vector<2x64xf32>
    %24 = arith.addf %23, %22 : vector<2x64xf32>
    %25 = arith.divf %23, %24 : vector<2x64xf32>
    %26 = vector.extract_strided_slice %12 {offsets = [0, 128], sizes = [2, 64], strides = [1, 1]} : vector<2x256xf32> to vector<2x64xf32>
    %27 = math.tanh %26 : vector<2x64xf32>
    %28 = vector.extract_strided_slice %12 {offsets = [0, 192], sizes = [2, 64], strides = [1, 1]} : vector<2x256xf32> to vector<2x64xf32>
    %29 = arith.negf %28 : vector<2x64xf32>
    %30 = math.exp %29 : vector<2x64xf32>
    %cst_14 = arith.constant 1.000000e+00 : f32
    %31 = vector.broadcast %cst_14 : f32 to vector<2x64xf32>
    %32 = arith.addf %31, %30 : vector<2x64xf32>
    %33 = arith.divf %31, %32 : vector<2x64xf32>
    %34 = arith.mulf %25, %9 : vector<2x64xf32>
    %35 = arith.mulf %19, %27 : vector<2x64xf32>
    %36 = arith.addf %34, %35 : vector<2x64xf32>
    %37 = math.tanh %36 : vector<2x64xf32>
    %38 = arith.mulf %33, %37 : vector<2x64xf32>
    %39 = arith.mulf %13, %38 : vector<2x64xf32>
    %cst_15 = arith.constant 1.000000e+00 : f32
    %40 = vector.broadcast %cst_15 : f32 to vector<2x64xf32>
    %41 = arith.subf %40, %13 : vector<2x64xf32>
    %42 = arith.mulf %41, %8 : vector<2x64xf32>
    %43 = arith.addf %39, %42 : vector<2x64xf32>
    %44 = arith.mulf %13, %36 : vector<2x64xf32>
    %cst_16 = arith.constant 1.000000e+00 : f32
    %45 = vector.broadcast %cst_16 : f32 to vector<2x64xf32>
    %46 = arith.subf %45, %13 : vector<2x64xf32>
    %47 = arith.mulf %46, %9 : vector<2x64xf32>
    %48 = arith.addf %44, %47 : vector<2x64xf32>
    %49 = vector.extract_strided_slice %39 {offsets = [0, 0], sizes = [2, 32], strides = [1, 1]} : vector<2x64xf32> to vector<2x32xf32>
    %c0_17 = arith.constant 0 : index
    %c0_18 = arith.constant 0 : index
    %c0_19 = arith.constant 0 : index
    %50 = vector.load %arg13[%c0_17, %c0_18, %c0_19] : memref<2x8x64xf32, #tpu.memory_space<vmem>>, vector<2x1x32xf32>
    %51 = vector.shape_cast %50 : vector<2x1x32xf32> to vector<2x32xf32>
    %52 = vector.shape_cast %49 : vector<2x32xf32> to vector<2x1x32xf32>
    tpu.vector_store %arg13[%c0_17, %c0_18, %c0_19], %52 {strides = array<i32>} : memref<2x8x64xf32, #tpu.memory_space<vmem>>, vector<2x1x32xf32>,
    %53 = vector.extract_strided_slice %39 {offsets = [0, 32], sizes = [2, 32], strides = [1, 1]} : vector<2x64xf32> to vector<2x32xf32>
    %c0_20 = arith.constant 0 : index
    %c7 = arith.constant 7 : index
    %c32 = arith.constant 32 : index
    %54 = vector.load %arg13[%c0_20, %c7, %c32] : memref<2x8x64xf32, #tpu.memory_space<vmem>>, vector<2x1x32xf32>
    %55 = vector.shape_cast %54 : vector<2x1x32xf32> to vector<2x32xf32>
    %56 = vector.shape_cast %53 : vector<2x32xf32> to vector<2x1x32xf32>
    tpu.vector_store %arg13[%c0_20, %c7, %c32], %56 {strides = array<i32>} : memref<2x8x64xf32, #tpu.memory_space<vmem>>, vector<2x1x32xf32>,
    %57 = vector.extract_strided_slice %5 {offsets = [2, 0], sizes = [2, 256], strides = [1, 1]} : vector<16x256xf32> to vector<2x256xf32>
    %cst_21 = arith.constant dense<0.000000e+00> : vector<2x256xf32>
    %58 = tpu.matmul %43, %6, %cst_21 {dimension_numbers = #tpu.dot_dimension_numbers<[1], [0], [0], [1], [0, 0, 1, 1], [], []>} : vector<2x64xf32>, vector<64x256xf32>, vector<2x256xf32> -> vector<2x256xf32>
    %59 = arith.addf %57, %58 : vector<2x256xf32>
    %60 = vector.extract_strided_slice %7 {offsets = [2, 0], sizes = [2, 64], strides = [1, 1]} : vector<16x64xf32> to vector<2x64xf32>
    %61 = vector.extract_strided_slice %59 {offsets = [0, 0], sizes = [2, 64], strides = [1, 1]} : vector<2x256xf32> to vector<2x64xf32>
    %62 = arith.negf %61 : vector<2x64xf32>
    %63 = math.exp %62 : vector<2x64xf32>
    %cst_22 = arith.constant 1.000000e+00 : f32
    %64 = vector.broadcast %cst_22 : f32 to vector<2x64xf32>
    %65 = arith.addf %64, %63 : vector<2x64xf32>
    %66 = arith.divf %64, %65 : vector<2x64xf32>
    %67 = vector.extract_strided_slice %59 {offsets = [0, 64], sizes = [2, 64], strides = [1, 1]} : vector<2x256xf32> to vector<2x64xf32>
    %68 = arith.negf %67 : vector<2x64xf32>
    %69 = math.exp %68 : vector<2x64xf32>
    %cst_23 = arith.constant 1.000000e+00 : f32
    %70 = vector.broadcast %cst_23 : f32 to vector<2x64xf32>
    %71 = arith.addf %70, %69 : vector<2x64xf32>
    %72 = arith.divf %70, %71 : vector<2x64xf32>
    %73 = vector.extract_strided_slice %59 {offsets = [0, 128], sizes = [2, 64], strides = [1, 1]} : vector<2x256xf32> to vector<2x64xf32>
    %74 = math.tanh %73 : vector<2x64xf32>
    %75 = vector.extract_strided_slice %59 {offsets = [0, 192], sizes = [2, 64], strides = [1, 1]} : vector<2x256xf32> to vector<2x64xf32>
    %76 = arith.negf %75 : vector<2x64xf32>
    %77 = math.exp %76 : vector<2x64xf32>
    %cst_24 = arith.constant 1.000000e+00 : f32
    %78 = vector.broadcast %cst_24 : f32 to vector<2x64xf32>
    %79 = arith.addf %78, %77 : vector<2x64xf32>
    %80 = arith.divf %78, %79 : vector<2x64xf32>
    %81 = arith.mulf %72, %48 : vector<2x64xf32>
    %82 = arith.mulf %66, %74 : vector<2x64xf32>
    %83 = arith.addf %81, %82 : vector<2x64xf32>
    %84 = math.tanh %83 : vector<2x64xf32>
    %85 = arith.mulf %80, %84 : vector<2x64xf32>
    %86 = arith.mulf %60, %85 : vector<2x64xf32>
    %cst_25 = arith.constant 1.000000e+00 : f32
    %87 = vector.broadcast %cst_25 : f32 to vector<2x64xf32>
    %88 = arith.subf %87, %60 : vector<2x64xf32>
    %89 = arith.mulf %88, %43 : vector<2x64xf32>
    %90 = arith.addf %86, %89 : vector<2x64xf32>
    %91 = arith.mulf %60, %83 : vector<2x64xf32>
    %cst_26 = arith.constant 1.000000e+00 : f32
    %92 = vector.broadcast %cst_26 : f32 to vector<2x64xf32>
    %93 = arith.subf %92, %60 : vector<2x64xf32>
    %94 = arith.mulf %93, %48 : vector<2x64xf32>
    %95 = arith.addf %91, %94 : vector<2x64xf32>
    %96 = vector.extract_strided_slice %86 {offsets = [0, 0], sizes = [2, 32], strides = [1, 1]} : vector<2x64xf32> to vector<2x32xf32>
    %c0_27 = arith.constant 0 : index
    %c1 = arith.constant 1 : index
    %c0_28 = arith.constant 0 : index
    %97 = vector.load %arg13[%c0_27, %c1, %c0_28] : memref<2x8x64xf32, #tpu.memory_space<vmem>>, vector<2x1x32xf32>
    %98 = vector.shape_cast %97 : vector<2x1x32xf32> to vector<2x32xf32>
    %99 = vector.shape_cast %96 : vector<2x32xf32> to vector<2x1x32xf32>
    tpu.vector_store %arg13[%c0_27, %c1, %c0_28], %99 {strides = array<i32>} : memref<2x8x64xf32, #tpu.memory_space<vmem>>, vector<2x1x32xf32>,
    %100 = vector.extract_strided_slice %86 {offsets = [0, 32], sizes = [2, 32], strides = [1, 1]} : vector<2x64xf32> to vector<2x32xf32>
    %c0_29 = arith.constant 0 : index
    %c6 = arith.constant 6 : index
    %c32_30 = arith.constant 32 : index
    %101 = vector.load %arg13[%c0_29, %c6, %c32_30] : memref<2x8x64xf32, #tpu.memory_space<vmem>>, vector<2x1x32xf32>
    %102 = vector.shape_cast %101 : vector<2x1x32xf32> to vector<2x32xf32>
    %103 = vector.shape_cast %100 : vector<2x32xf32> to vector<2x1x32xf32>
    tpu.vector_store %arg13[%c0_29, %c6, %c32_30], %103 {strides = array<i32>} : memref<2x8x64xf32, #tpu.memory_space<vmem>>, vector<2x1x32xf32>,
    %104 = vector.extract_strided_slice %5 {offsets = [4, 0], sizes = [2, 256], strides = [1, 1]} : vector<16x256xf32> to vector<2x256xf32>
    %cst_31 = arith.constant dense<0.000000e+00> : vector<2x256xf32>
    %105 = tpu.matmul %90, %6, %cst_31 {dimension_numbers = #tpu.dot_dimension_numbers<[1], [0], [0], [1], [0, 0, 1, 1], [], []>} : vector<2x64xf32>, vector<64x256xf32>, vector<2x256xf32> -> vector<2x256xf32>
    %106 = arith.addf %104, %105 : vector<2x256xf32>
    %107 = vector.extract_strided_slice %7 {offsets = [4, 0], sizes = [2, 64], strides = [1, 1]} : vector<16x64xf32> to vector<2x64xf32>
    %108 = vector.extract_strided_slice %106 {offsets = [0, 0], sizes = [2, 64], strides = [1, 1]} : vector<2x256xf32> to vector<2x64xf32>
    %109 = arith.negf %108 : vector<2x64xf32>
    %110 = math.exp %109 : vector<2x64xf32>
    %cst_32 = arith.constant 1.000000e+00 : f32
    %111 = vector.broadcast %cst_32 : f32 to vector<2x64xf32>
    %112 = arith.addf %111, %110 : vector<2x64xf32>
    %113 = arith.divf %111, %112 : vector<2x64xf32>
    %114 = vector.extract_strided_slice %106 {offsets = [0, 64], sizes = [2, 64], strides = [1, 1]} : vector<2x256xf32> to vector<2x64xf32>
    %115 = arith.negf %114 : vector<2x64xf32>
    %116 = math.exp %115 : vector<2x64xf32>
    %cst_33 = arith.constant 1.000000e+00 : f32
    %117 = vector.broadcast %cst_33 : f32 to vector<2x64xf32>
    %118 = arith.addf %117, %116 : vector<2x64xf32>
    %119 = arith.divf %117, %118 : vector<2x64xf32>
    %120 = vector.extract_strided_slice %106 {offsets = [0, 128], sizes = [2, 64], strides = [1, 1]} : vector<2x256xf32> to vector<2x64xf32>
    %121 = math.tanh %120 : vector<2x64xf32>
    %122 = vector.extract_strided_slice %106 {offsets = [0, 192], sizes = [2, 64], strides = [1, 1]} : vector<2x256xf32> to vector<2x64xf32>
    %123 = arith.negf %122 : vector<2x64xf32>
    %124 = math.exp %123 : vector<2x64xf32>
    %cst_34 = arith.constant 1.000000e+00 : f32
    %125 = vector.broadcast %cst_34 : f32 to vector<2x64xf32>
    %126 = arith.addf %125, %124 : vector<2x64xf32>
    %127 = arith.divf %125, %126 : vector<2x64xf32>
    %128 = arith.mulf %119, %95 : vector<2x64xf32>
    %129 = arith.mulf %113, %121 : vector<2x64xf32>
    %130 = arith.addf %128, %129 : vector<2x64xf32>
    %131 = math.tanh %130 : vector<2x64xf32>
    %132 = arith.mulf %127, %131 : vector<2x64xf32>
    %133 = arith.mulf %107, %132 : vector<2x64xf32>
    %cst_35 = arith.constant 1.000000e+00 : f32
    %134 = vector.broadcast %cst_35 : f32 to vector<2x64xf32>
    %135 = arith.subf %134, %107 : vector<2x64xf32>
    %136 = arith.mulf %135, %90 : vector<2x64xf32>
    %137 = arith.addf %133, %136 : vector<2x64xf32>
    %138 = arith.mulf %107, %130 : vector<2x64xf32>
    %cst_36 = arith.constant 1.000000e+00 : f32
    %139 = vector.broadcast %cst_36 : f32 to vector<2x64xf32>
    %140 = arith.subf %139, %107 : vector<2x64xf32>
    %141 = arith.mulf %140, %95 : vector<2x64xf32>
    %142 = arith.addf %138, %141 : vector<2x64xf32>
    %143 = vector.extract_strided_slice %133 {offsets = [0, 0], sizes = [2, 32], strides = [1, 1]} : vector<2x64xf32> to vector<2x32xf32>
    %c0_37 = arith.constant 0 : index
    %c2 = arith.constant 2 : index
    %c0_38 = arith.constant 0 : index
    %144 = vector.load %arg13[%c0_37, %c2, %c0_38] : memref<2x8x64xf32, #tpu.memory_space<vmem>>, vector<2x1x32xf32>
    %145 = vector.shape_cast %144 : vector<2x1x32xf32> to vector<2x32xf32>
    %146 = vector.shape_cast %143 : vector<2x32xf32> to vector<2x1x32xf32>
    tpu.vector_store %arg13[%c0_37, %c2, %c0_38], %146 {strides = array<i32>} : memref<2x8x64xf32, #tpu.memory_space<vmem>>, vector<2x1x32xf32>,
    %147 = vector.extract_strided_slice %133 {offsets = [0, 32], sizes = [2, 32], strides = [1, 1]} : vector<2x64xf32> to vector<2x32xf32>
    %c0_39 = arith.constant 0 : index
    %c5 = arith.constant 5 : index
    %c32_40 = arith.constant 32 : index
    %148 = vector.load %arg13[%c0_39, %c5, %c32_40] : memref<2x8x64xf32, #tpu.memory_space<vmem>>, vector<2x1x32xf32>
    %149 = vector.shape_cast %148 : vector<2x1x32xf32> to vector<2x32xf32>
    %150 = vector.shape_cast %147 : vector<2x32xf32> to vector<2x1x32xf32>
    tpu.vector_store %arg13[%c0_39, %c5, %c32_40], %150 {strides = array<i32>} : memref<2x8x64xf32, #tpu.memory_space<vmem>>, vector<2x1x32xf32>,
    %151 = vector.extract_strided_slice %5 {offsets = [6, 0], sizes = [2, 256], strides = [1, 1]} : vector<16x256xf32> to vector<2x256xf32>
    %cst_41 = arith.constant dense<0.000000e+00> : vector<2x256xf32>
    %152 = tpu.matmul %137, %6, %cst_41 {dimension_numbers = #tpu.dot_dimension_numbers<[1], [0], [0], [1], [0, 0, 1, 1], [], []>} : vector<2x64xf32>, vector<64x256xf32>, vector<2x256xf32> -> vector<2x256xf32>
    %153 = arith.addf %151, %152 : vector<2x256xf32>
    %154 = vector.extract_strided_slice %7 {offsets = [6, 0], sizes = [2, 64], strides = [1, 1]} : vector<16x64xf32> to vector<2x64xf32>
    %155 = vector.extract_strided_slice %153 {offsets = [0, 0], sizes = [2, 64], strides = [1, 1]} : vector<2x256xf32> to vector<2x64xf32>
    %156 = arith.negf %155 : vector<2x64xf32>
    %157 = math.exp %156 : vector<2x64xf32>
    %cst_42 = arith.constant 1.000000e+00 : f32
    %158 = vector.broadcast %cst_42 : f32 to vector<2x64xf32>
    %159 = arith.addf %158, %157 : vector<2x64xf32>
    %160 = arith.divf %158, %159 : vector<2x64xf32>
    %161 = vector.extract_strided_slice %153 {offsets = [0, 64], sizes = [2, 64], strides = [1, 1]} : vector<2x256xf32> to vector<2x64xf32>
    %162 = arith.negf %161 : vector<2x64xf32>
    %163 = math.exp %162 : vector<2x64xf32>
    %cst_43 = arith.constant 1.000000e+00 : f32
    %164 = vector.broadcast %cst_43 : f32 to vector<2x64xf32>
    %165 = arith.addf %164, %163 : vector<2x64xf32>
    %166 = arith.divf %164, %165 : vector<2x64xf32>
    %167 = vector.extract_strided_slice %153 {offsets = [0, 128], sizes = [2, 64], strides = [1, 1]} : vector<2x256xf32> to vector<2x64xf32>
    %168 = math.tanh %167 : vector<2x64xf32>
    %169 = vector.extract_strided_slice %153 {offsets = [0, 192], sizes = [2, 64], strides = [1, 1]} : vector<2x256xf32> to vector<2x64xf32>
    %170 = arith.negf %169 : vector<2x64xf32>
    %171 = math.exp %170 : vector<2x64xf32>
    %cst_44 = arith.constant 1.000000e+00 : f32
    %172 = vector.broadcast %cst_44 : f32 to vector<2x64xf32>
    %173 = arith.addf %172, %171 : vector<2x64xf32>
    %174 = arith.divf %172, %173 : vector<2x64xf32>
    %175 = arith.mulf %166, %142 : vector<2x64xf32>
    %176 = arith.mulf %160, %168 : vector<2x64xf32>
    %177 = arith.addf %175, %176 : vector<2x64xf32>
    %178 = math.tanh %177 : vector<2x64xf32>
    %179 = arith.mulf %174, %178 : vector<2x64xf32>
    %180 = arith.mulf %154, %179 : vector<2x64xf32>
    %cst_45 = arith.constant 1.000000e+00 : f32
    %181 = vector.broadcast %cst_45 : f32 to vector<2x64xf32>
    %182 = arith.subf %181, %154 : vector<2x64xf32>
    %183 = arith.mulf %182, %137 : vector<2x64xf32>
    %184 = arith.addf %180, %183 : vector<2x64xf32>
    %185 = arith.mulf %154, %177 : vector<2x64xf32>
    %cst_46 = arith.constant 1.000000e+00 : f32
    %186 = vector.broadcast %cst_46 : f32 to vector<2x64xf32>
    %187 = arith.subf %186, %154 : vector<2x64xf32>
    %188 = arith.mulf %187, %142 : vector<2x64xf32>
    %189 = arith.addf %185, %188 : vector<2x64xf32>
    %190 = vector.extract_strided_slice %180 {offsets = [0, 0], sizes = [2, 32], strides = [1, 1]} : vector<2x64xf32> to vector<2x32xf32>
    %c0_47 = arith.constant 0 : index
    %c3 = arith.constant 3 : index
    %c0_48 = arith.constant 0 : index
    %191 = vector.load %arg13[%c0_47, %c3, %c0_48] : memref<2x8x64xf32, #tpu.memory_space<vmem>>, vector<2x1x32xf32>
    %192 = vector.shape_cast %191 : vector<2x1x32xf32> to vector<2x32xf32>
    %193 = vector.shape_cast %190 : vector<2x32xf32> to vector<2x1x32xf32>
    tpu.vector_store %arg13[%c0_47, %c3, %c0_48], %193 {strides = array<i32>} : memref<2x8x64xf32, #tpu.memory_space<vmem>>, vector<2x1x32xf32>,
    %194 = vector.extract_strided_slice %180 {offsets = [0, 32], sizes = [2, 32], strides = [1, 1]} : vector<2x64xf32> to vector<2x32xf32>
    %c0_49 = arith.constant 0 : index
    %c4 = arith.constant 4 : index
    %c32_50 = arith.constant 32 : index
    %195 = vector.load %arg13[%c0_49, %c4, %c32_50] : memref<2x8x64xf32, #tpu.memory_space<vmem>>, vector<2x1x32xf32>
    %196 = vector.shape_cast %195 : vector<2x1x32xf32> to vector<2x32xf32>
    %197 = vector.shape_cast %194 : vector<2x32xf32> to vector<2x1x32xf32>
    tpu.vector_store %arg13[%c0_49, %c4, %c32_50], %197 {strides = array<i32>} : memref<2x8x64xf32, #tpu.memory_space<vmem>>, vector<2x1x32xf32>,
    %198 = vector.extract_strided_slice %5 {offsets = [8, 0], sizes = [2, 256], strides = [1, 1]} : vector<16x256xf32> to vector<2x256xf32>
    %cst_51 = arith.constant dense<0.000000e+00> : vector<2x256xf32>
    %199 = tpu.matmul %184, %6, %cst_51 {dimension_numbers = #tpu.dot_dimension_numbers<[1], [0], [0], [1], [0, 0, 1, 1], [], []>} : vector<2x64xf32>, vector<64x256xf32>, vector<2x256xf32> -> vector<2x256xf32>
    %200 = arith.addf %198, %199 : vector<2x256xf32>
    %201 = vector.extract_strided_slice %7 {offsets = [8, 0], sizes = [2, 64], strides = [1, 1]} : vector<16x64xf32> to vector<2x64xf32>
    %202 = vector.extract_strided_slice %200 {offsets = [0, 0], sizes = [2, 64], strides = [1, 1]} : vector<2x256xf32> to vector<2x64xf32>
    %203 = arith.negf %202 : vector<2x64xf32>
    %204 = math.exp %203 : vector<2x64xf32>
    %cst_52 = arith.constant 1.000000e+00 : f32
    %205 = vector.broadcast %cst_52 : f32 to vector<2x64xf32>
    %206 = arith.addf %205, %204 : vector<2x64xf32>
    %207 = arith.divf %205, %206 : vector<2x64xf32>
    %208 = vector.extract_strided_slice %200 {offsets = [0, 64], sizes = [2, 64], strides = [1, 1]} : vector<2x256xf32> to vector<2x64xf32>
    %209 = arith.negf %208 : vector<2x64xf32>
    %210 = math.exp %209 : vector<2x64xf32>
    %cst_53 = arith.constant 1.000000e+00 : f32
    %211 = vector.broadcast %cst_53 : f32 to vector<2x64xf32>
    %212 = arith.addf %211, %210 : vector<2x64xf32>
    %213 = arith.divf %211, %212 : vector<2x64xf32>
    %214 = vector.extract_strided_slice %200 {offsets = [0, 128], sizes = [2, 64], strides = [1, 1]} : vector<2x256xf32> to vector<2x64xf32>
    %215 = math.tanh %214 : vector<2x64xf32>
    %216 = vector.extract_strided_slice %200 {offsets = [0, 192], sizes = [2, 64], strides = [1, 1]} : vector<2x256xf32> to vector<2x64xf32>
    %217 = arith.negf %216 : vector<2x64xf32>
    %218 = math.exp %217 : vector<2x64xf32>
    %cst_54 = arith.constant 1.000000e+00 : f32
    %219 = vector.broadcast %cst_54 : f32 to vector<2x64xf32>
    %220 = arith.addf %219, %218 : vector<2x64xf32>
    %221 = arith.divf %219, %220 : vector<2x64xf32>
    %222 = arith.mulf %213, %189 : vector<2x64xf32>
    %223 = arith.mulf %207, %215 : vector<2x64xf32>
    %224 = arith.addf %222, %223 : vector<2x64xf32>
    %225 = math.tanh %224 : vector<2x64xf32>
    %226 = arith.mulf %221, %225 : vector<2x64xf32>
    %227 = arith.mulf %201, %226 : vector<2x64xf32>
    %cst_55 = arith.constant 1.000000e+00 : f32
    %228 = vector.broadcast %cst_55 : f32 to vector<2x64xf32>
    %229 = arith.subf %228, %201 : vector<2x64xf32>
    %230 = arith.mulf %229, %184 : vector<2x64xf32>
    %231 = arith.addf %227, %230 : vector<2x64xf32>
    %232 = arith.mulf %201, %224 : vector<2x64xf32>
    %cst_56 = arith.constant 1.000000e+00 : f32
    %233 = vector.broadcast %cst_56 : f32 to vector<2x64xf32>
    %234 = arith.subf %233, %201 : vector<2x64xf32>
    %235 = arith.mulf %234, %189 : vector<2x64xf32>
    %236 = arith.addf %232, %235 : vector<2x64xf32>
    %237 = vector.extract_strided_slice %227 {offsets = [0, 0], sizes = [2, 32], strides = [1, 1]} : vector<2x64xf32> to vector<2x32xf32>
    %c0_57 = arith.constant 0 : index
    %c4_58 = arith.constant 4 : index
    %c0_59 = arith.constant 0 : index
    %238 = vector.load %arg13[%c0_57, %c4_58, %c0_59] : memref<2x8x64xf32, #tpu.memory_space<vmem>>, vector<2x1x32xf32>
    %239 = vector.shape_cast %238 : vector<2x1x32xf32> to vector<2x32xf32>
    %240 = vector.shape_cast %237 : vector<2x32xf32> to vector<2x1x32xf32>
    tpu.vector_store %arg13[%c0_57, %c4_58, %c0_59], %240 {strides = array<i32>} : memref<2x8x64xf32, #tpu.memory_space<vmem>>, vector<2x1x32xf32>,
    %241 = vector.extract_strided_slice %227 {offsets = [0, 32], sizes = [2, 32], strides = [1, 1]} : vector<2x64xf32> to vector<2x32xf32>
    %c0_60 = arith.constant 0 : index
    %c3_61 = arith.constant 3 : index
    %c32_62 = arith.constant 32 : index
    %242 = vector.load %arg13[%c0_60, %c3_61, %c32_62] : memref<2x8x64xf32, #tpu.memory_space<vmem>>, vector<2x1x32xf32>
    %243 = vector.shape_cast %242 : vector<2x1x32xf32> to vector<2x32xf32>
    %244 = vector.shape_cast %241 : vector<2x32xf32> to vector<2x1x32xf32>
    tpu.vector_store %arg13[%c0_60, %c3_61, %c32_62], %244 {strides = array<i32>} : memref<2x8x64xf32, #tpu.memory_space<vmem>>, vector<2x1x32xf32>,
    %245 = vector.extract_strided_slice %5 {offsets = [10, 0], sizes = [2, 256], strides = [1, 1]} : vector<16x256xf32> to vector<2x256xf32>
    %cst_63 = arith.constant dense<0.000000e+00> : vector<2x256xf32>
    %246 = tpu.matmul %231, %6, %cst_63 {dimension_numbers = #tpu.dot_dimension_numbers<[1], [0], [0], [1], [0, 0, 1, 1], [], []>} : vector<2x64xf32>, vector<64x256xf32>, vector<2x256xf32> -> vector<2x256xf32>
    %247 = arith.addf %245, %246 : vector<2x256xf32>
    %248 = vector.extract_strided_slice %7 {offsets = [10, 0], sizes = [2, 64], strides = [1, 1]} : vector<16x64xf32> to vector<2x64xf32>
    %249 = vector.extract_strided_slice %247 {offsets = [0, 0], sizes = [2, 64], strides = [1, 1]} : vector<2x256xf32> to vector<2x64xf32>
    %250 = arith.negf %249 : vector<2x64xf32>
    %251 = math.exp %250 : vector<2x64xf32>
    %cst_64 = arith.constant 1.000000e+00 : f32
    %252 = vector.broadcast %cst_64 : f32 to vector<2x64xf32>
    %253 = arith.addf %252, %251 : vector<2x64xf32>
    %254 = arith.divf %252, %253 : vector<2x64xf32>
    %255 = vector.extract_strided_slice %247 {offsets = [0, 64], sizes = [2, 64], strides = [1, 1]} : vector<2x256xf32> to vector<2x64xf32>
    %256 = arith.negf %255 : vector<2x64xf32>
    %257 = math.exp %256 : vector<2x64xf32>
    %cst_65 = arith.constant 1.000000e+00 : f32
    %258 = vector.broadcast %cst_65 : f32 to vector<2x64xf32>
    %259 = arith.addf %258, %257 : vector<2x64xf32>
    %260 = arith.divf %258, %259 : vector<2x64xf32>
    %261 = vector.extract_strided_slice %247 {offsets = [0, 128], sizes = [2, 64], strides = [1, 1]} : vector<2x256xf32> to vector<2x64xf32>
    %262 = math.tanh %261 : vector<2x64xf32>
    %263 = vector.extract_strided_slice %247 {offsets = [0, 192], sizes = [2, 64], strides = [1, 1]} : vector<2x256xf32> to vector<2x64xf32>
    %264 = arith.negf %263 : vector<2x64xf32>
    %265 = math.exp %264 : vector<2x64xf32>
    %cst_66 = arith.constant 1.000000e+00 : f32
    %266 = vector.broadcast %cst_66 : f32 to vector<2x64xf32>
    %267 = arith.addf %266, %265 : vector<2x64xf32>
    %268 = arith.divf %266, %267 : vector<2x64xf32>
    %269 = arith.mulf %260, %236 : vector<2x64xf32>
    %270 = arith.mulf %254, %262 : vector<2x64xf32>
    %271 = arith.addf %269, %270 : vector<2x64xf32>
    %272 = math.tanh %271 : vector<2x64xf32>
    %273 = arith.mulf %268, %272 : vector<2x64xf32>
    %274 = arith.mulf %248, %273 : vector<2x64xf32>
    %cst_67 = arith.constant 1.000000e+00 : f32
    %275 = vector.broadcast %cst_67 : f32 to vector<2x64xf32>
    %276 = arith.subf %275, %248 : vector<2x64xf32>
    %277 = arith.mulf %276, %231 : vector<2x64xf32>
    %278 = arith.addf %274, %277 : vector<2x64xf32>
    %279 = arith.mulf %248, %271 : vector<2x64xf32>
    %cst_68 = arith.constant 1.000000e+00 : f32
    %280 = vector.broadcast %cst_68 : f32 to vector<2x64xf32>
    %281 = arith.subf %280, %248 : vector<2x64xf32>
    %282 = arith.mulf %281, %236 : vector<2x64xf32>
    %283 = arith.addf %279, %282 : vector<2x64xf32>
    %284 = vector.extract_strided_slice %274 {offsets = [0, 0], sizes = [2, 32], strides = [1, 1]} : vector<2x64xf32> to vector<2x32xf32>
    %c0_69 = arith.constant 0 : index
    %c5_70 = arith.constant 5 : index
    %c0_71 = arith.constant 0 : index
    %285 = vector.load %arg13[%c0_69, %c5_70, %c0_71] : memref<2x8x64xf32, #tpu.memory_space<vmem>>, vector<2x1x32xf32>
    %286 = vector.shape_cast %285 : vector<2x1x32xf32> to vector<2x32xf32>
    %287 = vector.shape_cast %284 : vector<2x32xf32> to vector<2x1x32xf32>
    tpu.vector_store %arg13[%c0_69, %c5_70, %c0_71], %287 {strides = array<i32>} : memref<2x8x64xf32, #tpu.memory_space<vmem>>, vector<2x1x32xf32>,
    %288 = vector.extract_strided_slice %274 {offsets = [0, 32], sizes = [2, 32], strides = [1, 1]} : vector<2x64xf32> to vector<2x32xf32>
    %c0_72 = arith.constant 0 : index
    %c2_73 = arith.constant 2 : index
    %c32_74 = arith.constant 32 : index
    %289 = vector.load %arg13[%c0_72, %c2_73, %c32_74] : memref<2x8x64xf32, #tpu.memory_space<vmem>>, vector<2x1x32xf32>
    %290 = vector.shape_cast %289 : vector<2x1x32xf32> to vector<2x32xf32>
    %291 = vector.shape_cast %288 : vector<2x32xf32> to vector<2x1x32xf32>
    tpu.vector_store %arg13[%c0_72, %c2_73, %c32_74], %291 {strides = array<i32>} : memref<2x8x64xf32, #tpu.memory_space<vmem>>, vector<2x1x32xf32>,
    %292 = vector.extract_strided_slice %5 {offsets = [12, 0], sizes = [2, 256], strides = [1, 1]} : vector<16x256xf32> to vector<2x256xf32>
    %cst_75 = arith.constant dense<0.000000e+00> : vector<2x256xf32>
    %293 = tpu.matmul %278, %6, %cst_75 {dimension_numbers = #tpu.dot_dimension_numbers<[1], [0], [0], [1], [0, 0, 1, 1], [], []>} : vector<2x64xf32>, vector<64x256xf32>, vector<2x256xf32> -> vector<2x256xf32>
    %294 = arith.addf %292, %293 : vector<2x256xf32>
    %295 = vector.extract_strided_slice %7 {offsets = [12, 0], sizes = [2, 64], strides = [1, 1]} : vector<16x64xf32> to vector<2x64xf32>
    %296 = vector.extract_strided_slice %294 {offsets = [0, 0], sizes = [2, 64], strides = [1, 1]} : vector<2x256xf32> to vector<2x64xf32>
    %297 = arith.negf %296 : vector<2x64xf32>
    %298 = math.exp %297 : vector<2x64xf32>
    %cst_76 = arith.constant 1.000000e+00 : f32
    %299 = vector.broadcast %cst_76 : f32 to vector<2x64xf32>
    %300 = arith.addf %299, %298 : vector<2x64xf32>
    %301 = arith.divf %299, %300 : vector<2x64xf32>
    %302 = vector.extract_strided_slice %294 {offsets = [0, 64], sizes = [2, 64], strides = [1, 1]} : vector<2x256xf32> to vector<2x64xf32>
    %303 = arith.negf %302 : vector<2x64xf32>
    %304 = math.exp %303 : vector<2x64xf32>
    %cst_77 = arith.constant 1.000000e+00 : f32
    %305 = vector.broadcast %cst_77 : f32 to vector<2x64xf32>
    %306 = arith.addf %305, %304 : vector<2x64xf32>
    %307 = arith.divf %305, %306 : vector<2x64xf32>
    %308 = vector.extract_strided_slice %294 {offsets = [0, 128], sizes = [2, 64], strides = [1, 1]} : vector<2x256xf32> to vector<2x64xf32>
    %309 = math.tanh %308 : vector<2x64xf32>
    %310 = vector.extract_strided_slice %294 {offsets = [0, 192], sizes = [2, 64], strides = [1, 1]} : vector<2x256xf32> to vector<2x64xf32>
    %311 = arith.negf %310 : vector<2x64xf32>
    %312 = math.exp %311 : vector<2x64xf32>
    %cst_78 = arith.constant 1.000000e+00 : f32
    %313 = vector.broadcast %cst_78 : f32 to vector<2x64xf32>
    %314 = arith.addf %313, %312 : vector<2x64xf32>
    %315 = arith.divf %313, %314 : vector<2x64xf32>
    %316 = arith.mulf %307, %283 : vector<2x64xf32>
    %317 = arith.mulf %301, %309 : vector<2x64xf32>
    %318 = arith.addf %316, %317 : vector<2x64xf32>
    %319 = math.tanh %318 : vector<2x64xf32>
    %320 = arith.mulf %315, %319 : vector<2x64xf32>
    %321 = arith.mulf %295, %320 : vector<2x64xf32>
    %cst_79 = arith.constant 1.000000e+00 : f32
    %322 = vector.broadcast %cst_79 : f32 to vector<2x64xf32>
    %323 = arith.subf %322, %295 : vector<2x64xf32>
    %324 = arith.mulf %323, %278 : vector<2x64xf32>
    %325 = arith.addf %321, %324 : vector<2x64xf32>
    %326 = arith.mulf %295, %318 : vector<2x64xf32>
    %cst_80 = arith.constant 1.000000e+00 : f32
    %327 = vector.broadcast %cst_80 : f32 to vector<2x64xf32>
    %328 = arith.subf %327, %295 : vector<2x64xf32>
    %329 = arith.mulf %328, %283 : vector<2x64xf32>
    %330 = arith.addf %326, %329 : vector<2x64xf32>
    %331 = vector.extract_strided_slice %321 {offsets = [0, 0], sizes = [2, 32], strides = [1, 1]} : vector<2x64xf32> to vector<2x32xf32>
    %c0_81 = arith.constant 0 : index
    %c6_82 = arith.constant 6 : index
    %c0_83 = arith.constant 0 : index
    %332 = vector.load %arg13[%c0_81, %c6_82, %c0_83] : memref<2x8x64xf32, #tpu.memory_space<vmem>>, vector<2x1x32xf32>
    %333 = vector.shape_cast %332 : vector<2x1x32xf32> to vector<2x32xf32>
    %334 = vector.shape_cast %331 : vector<2x32xf32> to vector<2x1x32xf32>
    tpu.vector_store %arg13[%c0_81, %c6_82, %c0_83], %334 {strides = array<i32>} : memref<2x8x64xf32, #tpu.memory_space<vmem>>, vector<2x1x32xf32>,
    %335 = vector.extract_strided_slice %321 {offsets = [0, 32], sizes = [2, 32], strides = [1, 1]} : vector<2x64xf32> to vector<2x32xf32>
    %c0_84 = arith.constant 0 : index
    %c1_85 = arith.constant 1 : index
    %c32_86 = arith.constant 32 : index
    %336 = vector.load %arg13[%c0_84, %c1_85, %c32_86] : memref<2x8x64xf32, #tpu.memory_space<vmem>>, vector<2x1x32xf32>
    %337 = vector.shape_cast %336 : vector<2x1x32xf32> to vector<2x32xf32>
    %338 = vector.shape_cast %335 : vector<2x32xf32> to vector<2x1x32xf32>
    tpu.vector_store %arg13[%c0_84, %c1_85, %c32_86], %338 {strides = array<i32>} : memref<2x8x64xf32, #tpu.memory_space<vmem>>, vector<2x1x32xf32>,
    %339 = vector.extract_strided_slice %5 {offsets = [14, 0], sizes = [2, 256], strides = [1, 1]} : vector<16x256xf32> to vector<2x256xf32>
    %cst_87 = arith.constant dense<0.000000e+00> : vector<2x256xf32>
    %340 = tpu.matmul %325, %6, %cst_87 {dimension_numbers = #tpu.dot_dimension_numbers<[1], [0], [0], [1], [0, 0, 1, 1], [], []>} : vector<2x64xf32>, vector<64x256xf32>, vector<2x256xf32> -> vector<2x256xf32>
    %341 = arith.addf %339, %340 : vector<2x256xf32>
    %342 = vector.extract_strided_slice %7 {offsets = [14, 0], sizes = [2, 64], strides = [1, 1]} : vector<16x64xf32> to vector<2x64xf32>
    %343 = vector.extract_strided_slice %341 {offsets = [0, 0], sizes = [2, 64], strides = [1, 1]} : vector<2x256xf32> to vector<2x64xf32>
    %344 = arith.negf %343 : vector<2x64xf32>
    %345 = math.exp %344 : vector<2x64xf32>
    %cst_88 = arith.constant 1.000000e+00 : f32
    %346 = vector.broadcast %cst_88 : f32 to vector<2x64xf32>
    %347 = arith.addf %346, %345 : vector<2x64xf32>
    %348 = arith.divf %346, %347 : vector<2x64xf32>
    %349 = vector.extract_strided_slice %341 {offsets = [0, 64], sizes = [2, 64], strides = [1, 1]} : vector<2x256xf32> to vector<2x64xf32>
    %350 = arith.negf %349 : vector<2x64xf32>
    %351 = math.exp %350 : vector<2x64xf32>
    %cst_89 = arith.constant 1.000000e+00 : f32
    %352 = vector.broadcast %cst_89 : f32 to vector<2x64xf32>
    %353 = arith.addf %352, %351 : vector<2x64xf32>
    %354 = arith.divf %352, %353 : vector<2x64xf32>
    %355 = vector.extract_strided_slice %341 {offsets = [0, 128], sizes = [2, 64], strides = [1, 1]} : vector<2x256xf32> to vector<2x64xf32>
    %356 = math.tanh %355 : vector<2x64xf32>
    %357 = vector.extract_strided_slice %341 {offsets = [0, 192], sizes = [2, 64], strides = [1, 1]} : vector<2x256xf32> to vector<2x64xf32>
    %358 = arith.negf %357 : vector<2x64xf32>
    %359 = math.exp %358 : vector<2x64xf32>
    %cst_90 = arith.constant 1.000000e+00 : f32
    %360 = vector.broadcast %cst_90 : f32 to vector<2x64xf32>
    %361 = arith.addf %360, %359 : vector<2x64xf32>
    %362 = arith.divf %360, %361 : vector<2x64xf32>
    %363 = arith.mulf %354, %330 : vector<2x64xf32>
    %364 = arith.mulf %348, %356 : vector<2x64xf32>
    %365 = arith.addf %363, %364 : vector<2x64xf32>
    %366 = math.tanh %365 : vector<2x64xf32>
    %367 = arith.mulf %362, %366 : vector<2x64xf32>
    %368 = arith.mulf %342, %367 : vector<2x64xf32>
    %369 = vector.extract_strided_slice %368 {offsets = [0, 0], sizes = [2, 32], strides = [1, 1]} : vector<2x64xf32> to vector<2x32xf32>
    %c0_91 = arith.constant 0 : index
    %c7_92 = arith.constant 7 : index
    %c0_93 = arith.constant 0 : index
    %370 = vector.load %arg13[%c0_91, %c7_92, %c0_93] : memref<2x8x64xf32, #tpu.memory_space<vmem>>, vector<2x1x32xf32>
    %371 = vector.shape_cast %370 : vector<2x1x32xf32> to vector<2x32xf32>
    %372 = vector.shape_cast %369 : vector<2x32xf32> to vector<2x1x32xf32>
    tpu.vector_store %arg13[%c0_91, %c7_92, %c0_93], %372 {strides = array<i32>} : memref<2x8x64xf32, #tpu.memory_space<vmem>>, vector<2x1x32xf32>,
    %373 = vector.extract_strided_slice %368 {offsets = [0, 32], sizes = [2, 32], strides = [1, 1]} : vector<2x64xf32> to vector<2x32xf32>
    %c0_94 = arith.constant 0 : index
    %c0_95 = arith.constant 0 : index
    %c32_96 = arith.constant 32 : index
    %374 = vector.load %arg13[%c0_94, %c0_95, %c32_96] : memref<2x8x64xf32, #tpu.memory_space<vmem>>, vector<2x1x32xf32>
    %375 = vector.shape_cast %374 : vector<2x1x32xf32> to vector<2x32xf32>
    %376 = vector.shape_cast %373 : vector<2x32xf32> to vector<2x1x32xf32>
    tpu.vector_store %arg13[%c0_94, %c0_95, %c32_96], %376 {strides = array<i32>} : memref<2x8x64xf32, #tpu.memory_space<vmem>>, vector<2x1x32xf32>,
    %c0_97 = arith.constant 0 : index
    %c0_98 = arith.constant 0 : index
    %c0_99 = arith.constant 0 : index
    %377 = vector.load %arg13[%c0_97, %c0_98, %c0_99] : memref<2x8x64xf32, #tpu.memory_space<vmem>>, vector<2x8x64xf32>
    %378 = vector.shape_cast %377 : vector<2x8x64xf32> to vector<16x64xf32>
    %c0_100 = arith.constant 0 : index
    %c0_101 = arith.constant 0 : index
    %379 = vector.load %arg6[%c0_100, %c0_101] : memref<64x32xf32, #tpu.memory_space<vmem>>, vector<64x32xf32>
    %cst_102 = arith.constant dense<0.000000e+00> : vector<16x32xf32>
    %380 = tpu.matmul %378, %379, %cst_102 {dimension_numbers = #tpu.dot_dimension_numbers<[1], [0], [0], [1], [0, 0, 1, 1], [], []>} : vector<16x64xf32>, vector<64x32xf32>, vector<16x32xf32> -> vector<16x32xf32>
    %c0_103 = arith.constant 0 : index
    %c0_104 = arith.constant 0 : index
    %381 = vector.load %arg7[%c0_103, %c0_104] : memref<1x32xf32, #tpu.memory_space<vmem>>, vector<1x32xf32>
    %382 = vector.broadcast %381 : vector<1x32xf32> to vector<16x32xf32>
    %383 = arith.addf %380, %382 : vector<16x32xf32>
    %384 = math.tanh %383 : vector<16x32xf32>
    %385 = vector.shape_cast %384 : vector<16x32xf32> to vector<2x8x32xf32>
    %c0_105 = arith.constant 0 : index
    %c0_106 = arith.constant 0 : index
    %386 = vector.load %arg8[%c0_105, %c0_106] : memref<1x32xf32, #tpu.memory_space<vmem>>, vector<1x32xf32>
    %387 = vector.shape_cast %386 : vector<1x32xf32> to vector<1x1x32xf32>
    %388 = vector.broadcast %387 : vector<1x1x32xf32> to vector<2x8x32xf32>
    %389 = arith.mulf %385, %388 : vector<2x8x32xf32>
    %cst_107 = arith.constant dense<0.000000e+00> : vector<2x8xf32>
    %390 = vector.multi_reduction <add>, %389, %cst_107 [2] : vector<2x8x32xf32> to vector<2x8xf32>
    %c0_108 = arith.constant 0 : index
    %c0_109 = arith.constant 0 : index
    %391 = vector.load %arg2[%c0_108, %c0_109] : memref<2x8xf32, #tpu.memory_space<vmem>>, vector<2x8xf32>
    %cst_110 = arith.constant 5.000000e-01 : f32
    %392 = vector.broadcast %cst_110 : f32 to vector<2x8xf32>
    %393 = arith.cmpf ogt, %391, %392 : vector<2x8xf32>
    %cst_111 = arith.constant 0xFF800000 : f32
    %394 = vector.broadcast %cst_111 : f32 to vector<2x8xf32>
    %395 = arith.select %393, %390, %394 : vector<2x8xi1>, vector<2x8xf32>
    %cst_112 = arith.constant dense<0xFF800000> : vector<2xf32>
    %396 = vector.multi_reduction <maximumf>, %395, %cst_112 [1] : vector<2x8xf32> to vector<2xf32>
    %397 = vector.shape_cast %396 : vector<2xf32> to vector<2x1xf32>
    %398 = vector.broadcast %397 : vector<2x1xf32> to vector<2x8xf32>
    %399 = arith.subf %395, %398 : vector<2x8xf32>
    %400 = math.exp %399 : vector<2x8xf32>
    %cst_113 = arith.constant dense<0.000000e+00> : vector<2xf32>
    %401 = vector.multi_reduction <add>, %400, %cst_113 [1] : vector<2x8xf32> to vector<2xf32>
    %402 = vector.shape_cast %401 : vector<2xf32> to vector<2x1xf32>
    %403 = vector.broadcast %402 : vector<2x1xf32> to vector<2x8xf32>
    %404 = arith.divf %400, %403 : vector<2x8xf32>
    %c0_114 = arith.constant 0 : index
    %c0_115 = arith.constant 0 : index
    %405 = vector.load %arg12[%c0_114, %c0_115] : memref<2x8xf32, #tpu.memory_space<vmem>>, vector<2x8xf32>
    tpu.vector_store %arg12[%c0_114, %c0_115], %404 {strides = array<i32>} : memref<2x8xf32, #tpu.memory_space<vmem>>, vector<2x8xf32>,
    %406 = vector.shape_cast %404 : vector<2x8xf32> to vector<2x8x1xf32>
    %407 = vector.broadcast %406 : vector<2x8x1xf32> to vector<2x8x64xf32>
    %408 = arith.mulf %407, %377 : vector<2x8x64xf32>
    %cst_116 = arith.constant dense<0.000000e+00> : vector<2x64xf32>
    %409 = vector.multi_reduction <add>, %408, %cst_116 [1] : vector<2x8x64xf32> to vector<2x64xf32>
    %c0_117 = arith.constant 0 : index
    %c0_118 = arith.constant 0 : index
    %410 = vector.load %arg9[%c0_117, %c0_118] : memref<64x2xf32, #tpu.memory_space<vmem>>, vector<64x2xf32>
    %cst_119 = arith.constant dense<0.000000e+00> : vector<2x2xf32>
    %411 = tpu.matmul %409, %410, %cst_119 {dimension_numbers = #tpu.dot_dimension_numbers<[1], [0], [0], [1], [0, 0, 1, 1], [], []>} : vector<2x64xf32>, vector<64x2xf32>, vector<2x2xf32> -> vector<2x2xf32>
    %c0_120 = arith.constant 0 : index
    %c0_121 = arith.constant 0 : index
    %412 = vector.load %arg10[%c0_120, %c0_121] : memref<1x2xf32, #tpu.memory_space<vmem>>, vector<1x2xf32>
    %413 = vector.broadcast %412 : vector<1x2xf32> to vector<2x2xf32>
    %414 = arith.addf %411, %413 : vector<2x2xf32>
    %c0_122 = arith.constant 0 : index
    %c0_123 = arith.constant 0 : index
    %415 = vector.load %arg11[%c0_122, %c0_123] : memref<2x2xf32, #tpu.memory_space<vmem>>, vector<2x2xf32>
    tpu.vector_store %arg11[%c0_122, %c0_123], %414 {strides = array<i32>} : memref<2x2xf32, #tpu.memory_space<vmem>>, vector<2x2xf32>,
    return
  }
}

</mosaic_0001>

<llo_original>
// kernel: attention_lstm_forward.1
$region0: #{attention_lstm_forward.1}
  #allocation0 [shape = 'u32[]', space=smem, size = 0x4, offset = 0x4, fixed_abs, tag = 'smem constant byte address 0x4 - core index']
  #allocation1 [shape = 'u32[144,128]{1,0:T(1,128)}', space=vmem, size = 0x12000, scoped, tag = 'internal scratch']
  #allocation2 [shape = 'f32[2,8,64]{2,1,0:T(8,128)}', space=vmem, size = 0x2000, scoped, tag = 'scratch operand']
  %s0 = inlined_call_operand.vmem [shape: f32[16,32], index: 0, kind: input, shape index: {}]
  %s1 = inlined_call_operand.vmem [shape: f32[16,64], index: 1, kind: input, shape index: {}]
  %s2 = inlined_call_operand.vmem [shape: f32[2,8], index: 2, kind: input, shape index: {}]
  %s3 = inlined_call_operand.vmem [shape: f32[32,256], index: 3, kind: input, shape index: {}]
  %s4 = inlined_call_operand.vmem [shape: f32[64,256], index: 4, kind: input, shape index: {}]
  %s5 = inlined_call_operand.vmem [shape: f32[1,256], index: 5, kind: input, shape index: {}]
  %s6 = inlined_call_operand.vmem [shape: f32[64,32], index: 6, kind: input, shape index: {}]
  %s7 = inlined_call_operand.vmem [shape: f32[1,32], index: 7, kind: input, shape index: {}]
  %s8 = inlined_call_operand.vmem [shape: f32[1,32], index: 8, kind: input, shape index: {}]
  %s9 = inlined_call_operand.vmem [shape: f32[64,2], index: 9, kind: input, shape index: {}]
  %s10 = inlined_call_operand.vmem [shape: f32[1,2], index: 10, kind: input, shape index: {}]
  %s11 = inlined_call_operand.hbm [shape: f32[2,2], index: 11, kind: output, shape index: {0}]
  %s12 = inlined_call_operand.hbm [shape: f32[2,8], index: 12, kind: output, shape index: {1}]
  %13 = xla_tuple %s11, %s12
  %s14 = sld [smem:[#allocation0]]
  $region62: #{attention_lstm_forward.1} parent=0
    _
  %s16 = ssub.s32 1, %s14
  %s17 = scalar_select 0, %s16, %s14
  $region1: #{attention_lstm_forward.1} parent=0
    #allocation3 [shape = 'u8[1024]{0}', space=vmem, size = 0x400, scoped, tag = 'output window, operand 0, single buffered']
    #allocation4 [shape = 's32[1]{0}', space=sflag, size = 0x4, scoped, tag = 'scoped memory for attention_lstm_forward.1']
    #allocation5 [shape = 'u8[1024]{0}', space=vmem, size = 0x400, scoped, tag = 'output window, operand 1, single buffered']
    #allocation6 [shape = 's32[1]{0}', space=sflag, size = 0x4, scoped, tag = 'scoped memory for attention_lstm_forward.1']
    %18 = vsyncpa [#allocation4], 0
    %19 = vsyncpa [#allocation6], 0
    // Predicated region
    $region2: #{attention_lstm_forward.1} parent=1 // pred_check
      _
    $region3: #{attention_lstm_forward.1} parent=1 // pred_check_branch
      %21 = sbr.rel (0) target = $region5
    $region4: #{attention_lstm_forward.1} parent=1 // pred_region
      _
    $region5: #{attention_lstm_forward.1} parent=1 // pred_fallthru
      _
    // Predicated region
    $region6: #{attention_lstm_forward.1} parent=1 // pred_check
      _
    $region7: #{attention_lstm_forward.1} parent=1 // pred_check_branch
      %23 = sbr.rel (0) target = $region9
    $region8: #{attention_lstm_forward.1} parent=1 // pred_region
      _
    $region9: #{attention_lstm_forward.1} parent=1 // pred_fallthru
      _
    // Predicated region
    $region10: #{attention_lstm_forward.1} parent=1 // pred_check
      _
    $region11: #{attention_lstm_forward.1} parent=1 // pred_check_branch
      %25 = sbr.rel (0) target = $region13
    $region12: #{attention_lstm_forward.1} parent=1 // pred_region
      _
    $region13: #{attention_lstm_forward.1} parent=1 // pred_fallthru
      _
    // Predicated region
    $region14: #{attention_lstm_forward.1} parent=1 // pred_check
      _
    $region15: #{attention_lstm_forward.1} parent=1 // pred_check_branch
      %27 = sbr.rel (0) target = $region17
    $region16: #{attention_lstm_forward.1} parent=1 // pred_region
      _
    $region17: #{attention_lstm_forward.1} parent=1 // pred_fallthru
      _
    // Predicated region
    $region18: #{attention_lstm_forward.1} parent=1 // pred_check
      _
    $region19: #{attention_lstm_forward.1} parent=1 // pred_check_branch
      %29 = sbr.rel (0) target = $region21
    $region20: #{attention_lstm_forward.1} parent=1 // pred_region
      _
    $region21: #{attention_lstm_forward.1} parent=1 // pred_fallthru
      _
    // Predicated region
    $region22: #{attention_lstm_forward.1} parent=1 // pred_check
      _
    $region23: #{attention_lstm_forward.1} parent=1 // pred_check_branch
      %31 = sbr.rel (0) target = $region25
    $region24: #{attention_lstm_forward.1} parent=1 // pred_region
      _
    $region25: #{attention_lstm_forward.1} parent=1 // pred_fallthru
      _
    // Predicated region
    $region26: #{attention_lstm_forward.1} parent=1 // pred_check
      _
    $region27: #{attention_lstm_forward.1} parent=1 // pred_check_branch
      %33 = sbr.rel (0) target = $region29
    $region28: #{attention_lstm_forward.1} parent=1 // pred_region
      _
    $region29: #{attention_lstm_forward.1} parent=1 // pred_fallthru
      _
    // Predicated region
    $region30: #{attention_lstm_forward.1} parent=1 // pred_check
      _
    $region31: #{attention_lstm_forward.1} parent=1 // pred_check_branch
      %35 = sbr.rel (0) target = $region33
    $region32: #{attention_lstm_forward.1} parent=1 // pred_region
      _
    $region33: #{attention_lstm_forward.1} parent=1 // pred_fallthru
      _
    // Predicated region
    $region34: #{attention_lstm_forward.1} parent=1 // pred_check
      _
    $region35: #{attention_lstm_forward.1} parent=1 // pred_check_branch
      %37 = sbr.rel (0) target = $region37
    $region36: #{attention_lstm_forward.1} parent=1 // pred_region
      _
    $region37: #{attention_lstm_forward.1} parent=1 // pred_fallthru
      _
    // Predicated region
    $region38: #{attention_lstm_forward.1} parent=1 // pred_check
      _
    $region39: #{attention_lstm_forward.1} parent=1 // pred_check_branch
      %39 = sbr.rel (0) target = $region41
    $region40: #{attention_lstm_forward.1} parent=1 // pred_region
      _
    $region41: #{attention_lstm_forward.1} parent=1 // pred_fallthru
      _
    // Predicated region
    $region42: #{attention_lstm_forward.1} parent=1 // pred_check
      _
    $region43: #{attention_lstm_forward.1} parent=1 // pred_check_branch
      %41 = sbr.rel (0) target = $region45
    $region44: #{attention_lstm_forward.1} parent=1 // pred_region
      _
    $region45: #{attention_lstm_forward.1} parent=1 // pred_fallthru
      _
    %v42 = vld [vmem:[%s0] sm:$0xff]
    %v43 = vld [vmem:[%s0 + $0x8] sm:$0xff]
    %v44 = vld [vmem:[%s3] sm:$0xff]
    %v45 = vld [vmem:[%s3 + $0x8] sm:$0xff]
    %v46 = vld [vmem:[%s3 + $0x10] sm:$0xff]
    %v47 = vld [vmem:[%s3 + $0x18] sm:$0xff]
    %v48 = vld [vmem:[%s3 + $0x20] sm:$0xff]
    %v49 = vld [vmem:[%s3 + $0x28] sm:$0xff]
    %v50 = vld [vmem:[%s3 + $0x30] sm:$0xff]
    %v51 = vld [vmem:[%s3 + $0x38] sm:$0xff]
    %v52 = vld [vmem:[%s5] sm:$0x3]
    %v54 = vlaneseq
    %v55 = vshrl.u32 %v54, 7
    %v56 = vsub.s32 0, %v55
    %v57 = vrot.slane %v52, %v56
    %v58 = vlaneseq
    %v59 = vshrl.u32 %v58, 7
    %v60 = vsub.s32 1, %v59
    %v61 = vrot.slane %v52, %v60
    %vm64 = vcmask 261120
    %v66 = vsel %vm64, %v42, 0
    %v69 = vsel %vm64, %v43, 0
    %71 = vmatprep.subr.mxu0 %v45
    %72 = vmatpush1.msra.mxu0 %v44
    %73 = vmatprep.subr.mxu0 %v47
    %74 = vmatpush1.msra.mxu0 %v46
    %75 = vmatprep.subr.mxu0 %v49
    %76 = vmatpush1.msra.mxu0 %v48
    %77 = vmatprep.subr.mxu0 %v51
    %78 = vmatpush1.msra.mxu0 %v50
    %79 = vmatprep.subr.mxu0 0.0
    %80 = vmatpush1.msra.mxu0 0.0
    %81 = vmatprep.subr.mxu0 0.0
    %82 = vmatpush1.msra.mxu0 0.0
    %83 = vmatprep.subr.mxu0 0.0
    %84 = vmatpush1.msra.mxu0 0.0
    %85 = vmatprep.subr.mxu0 0.0
    %86 = vmatpush1.msra.mxu0 0.0
    %87 = vmatprep.subr.mxu0 0.0
    %88 = vmatpush1.msra.mxu0 0.0
    %89 = vmatprep.subr.mxu0 0.0
    %90 = vmatpush1.msra.mxu0 0.0
    %91 = vmatprep.subr.mxu0 0.0
    %92 = vmatpush1.msra.mxu0 0.0
    %93 = vmatprep.subr.mxu0 0.0
    %94 = vmatpush1.msra.mxu0 0.0
    %95 = vmatprep.subr.mxu0 0.0
    %96 = vmatpush1.msra.mxu0 0.0
    %97 = vmatprep.subr.mxu0 0.0
    %98 = vmatpush1.msra.mxu0 0.0
    %99 = vmatprep.subr.mxu0 0.0
    %100 = vmatpush1.msra.mxu0 0.0
    %101 = vmatprep.subr.mxu0 0.0
    %102 = vmatpush1.msra.mxu0 0.0
    %103 = vmatprep.subr.mxu0 0.0
    %104 = vmatpush1.msra.mxu0 0.0
    %105 = vmatprep.subr.mxu0 0.0
    %106 = vmatpush1.msra.mxu0 0.0
    %107 = vmatprep.subr.mxu0 0.0
    %108 = vmatpush1.msra.mxu0 0.0
    %109 = vmatprep.subr.mxu0 0.0
    %110 = vmatpush1.msra.mxu0 0.0
    %111 = vmatprep.subr.mxu0 0.0
    %112 = vmatpush1.msra.mxu0 0.0
    %113 = vmatprep.subr.mxu0 0.0
    %114 = vmatpush1.msra.mxu0 0.0
    %115 = vmatprep.subr.mxu0 0.0
    %116 = vmatpush1.msra.mxu0 0.0
    %117 = vmatprep.subr.mxu0 0.0
    %118 = vmatpush1.msra.mxu0 0.0
    %119 = vmatprep.subr.mxu0 0.0
    %120 = vmatpush1.msra.mxu0 0.0
    %121 = vmatprep.subr.mxu0 0.0
    %122 = vmatpush1.msra.mxu0 0.0
    %123 = vmatprep.subr.mxu0 0.0
    %124 = vmatpush1.msra.mxu0 0.0
    %125 = vmatprep.subr.mxu0 0.0
    %126 = vmatpush1.msra.mxu0 0.0
    %127 = vmatprep.subr.mxu0 0.0
    %128 = vmatpush1.msra.mxu0 0.0
    %129 = vmatprep.subr.mxu0 0.0
    %130 = vmatpush1.msra.mxu0 0.0
    %131 = vmatprep.subr.mxu0 0.0
    %132 = vmatpush1.msra.mxu0 0.0
    %133 = vmatprep.subr.mxu0 0.0
    %134 = vmatpush1.msra.mxu0 0.0
    %135 = vmatprep.mubr.f32.mxu0 0.0
    %136 = vmatmul.mubr.f32.gmra.mrb[0].mxu0 %v66
    %v137 = vpop.f32.mrb[0].mxu0
    %v138 = vadd.f32 %v57, %v137
    %v139 = vpop.f32.mrb[0].mxu0
    %v140 = vadd.f32 %v61, %v139
    %141 = vmatprep.mubr.f32.mxu0 0.0
    %142 = vmatmul.mubr.f32.gmra.mrb[0].mxu0 %v69
    %v143 = vpop.f32.mrb[0].mxu0
    %v144 = vadd.f32 %v57, %v143
    %v145 = vpop.f32.mrb[0].mxu0
    %v146 = vadd.f32 %v61, %v145
    %147 = vdwg.mxu0
    %v148 = vld [vmem:[%s4] sm:$0xff]
    %v149 = vld [vmem:[%s4 + $0x8] sm:$0xff]
    %v150 = vld [vmem:[%s4 + $0x10] sm:$0xff]
    %v151 = vld [vmem:[%s4 + $0x18] sm:$0xff]
    %v152 = vld [vmem:[%s4 + $0x20] sm:$0xff]
    %v153 = vld [vmem:[%s4 + $0x28] sm:$0xff]
    %v154 = vld [vmem:[%s4 + $0x30] sm:$0xff]
    %v155 = vld [vmem:[%s4 + $0x38] sm:$0xff]
    %v156 = vld [vmem:[%s4 + $0x40] sm:$0xff]
    %v157 = vld [vmem:[%s4 + $0x48] sm:$0xff]
    %v158 = vld [vmem:[%s4 + $0x50] sm:$0xff]
    %v159 = vld [vmem:[%s4 + $0x58] sm:$0xff]
    %v160 = vld [vmem:[%s4 + $0x60] sm:$0xff]
    %v161 = vld [vmem:[%s4 + $0x68] sm:$0xff]
    %v162 = vld [vmem:[%s4 + $0x70] sm:$0xff]
    %v163 = vld [vmem:[%s4 + $0x78] sm:$0xff]
    %v164 = vld [vmem:[%s1] sm:$0xff]
    %v165 = vld [vmem:[%s1 + $0x8] sm:$0xff]
    %vm166 = vcmask 523264
    %v168 = vsel %vm166, 0.0, 0
    %170 = vmatprep.subr.mxu0 %v149
    %171 = vmatpush1.msra.mxu0 %v148
    %172 = vmatprep.subr.mxu0 %v151
    %173 = vmatpush1.msra.mxu0 %v150
    %174 = vmatprep.subr.mxu0 %v153
    %175 = vmatpush1.msra.mxu0 %v152
    %176 = vmatprep.subr.mxu0 %v155
    %177 = vmatpush1.msra.mxu0 %v154
    %178 = vmatprep.subr.mxu0 %v157
    %179 = vmatpush1.msra.mxu0 %v156
    %180 = vmatprep.subr.mxu0 %v159
    %181 = vmatpush1.msra.mxu0 %v158
    %182 = vmatprep.subr.mxu0 %v161
    %183 = vmatpush1.msra.mxu0 %v160
    %184 = vmatprep.subr.mxu0 %v163
    %185 = vmatpush1.msra.mxu0 %v162
    %186 = vmatprep.subr.mxu0 0.0
    %187 = vmatpush1.msra.mxu0 0.0
    %188 = vmatprep.subr.mxu0 0.0
    %189 = vmatpush1.msra.mxu0 0.0
    %190 = vmatprep.subr.mxu0 0.0
    %191 = vmatpush1.msra.mxu0 0.0
    %192 = vmatprep.subr.mxu0 0.0
    %193 = vmatpush1.msra.mxu0 0.0
    %194 = vmatprep.subr.mxu0 0.0
    %195 = vmatpush1.msra.mxu0 0.0
    %196 = vmatprep.subr.mxu0 0.0
    %197 = vmatpush1.msra.mxu0 0.0
    %198 = vmatprep.subr.mxu0 0.0
    %199 = vmatpush1.msra.mxu0 0.0
    %200 = vmatprep.subr.mxu0 0.0
    %201 = vmatpush1.msra.mxu0 0.0
    %202 = vmatprep.subr.mxu0 0.0
    %203 = vmatpush1.msra.mxu0 0.0
    %204 = vmatprep.subr.mxu0 0.0
    %205 = vmatpush1.msra.mxu0 0.0
    %206 = vmatprep.subr.mxu0 0.0
    %207 = vmatpush1.msra.mxu0 0.0
    %208 = vmatprep.subr.mxu0 0.0
    %209 = vmatpush1.msra.mxu0 0.0
    %210 = vmatprep.subr.mxu0 0.0
    %211 = vmatpush1.msra.mxu0 0.0
    %212 = vmatprep.subr.mxu0 0.0
    %213 = vmatpush1.msra.mxu0 0.0
    %214 = vmatprep.subr.mxu0 0.0
    %215 = vmatpush1.msra.mxu0 0.0
    %216 = vmatprep.subr.mxu0 0.0
    %217 = vmatpush1.msra.mxu0 0.0
    %218 = vmatprep.subr.mxu0 0.0
    %219 = vmatpush1.msra.mxu0 0.0
    %220 = vmatprep.subr.mxu0 0.0
    %221 = vmatpush1.msra.mxu0 0.0
    %222 = vmatprep.subr.mxu0 0.0
    %223 = vmatpush1.msra.mxu0 0.0
    %224 = vmatprep.subr.mxu0 0.0
    %225 = vmatpush1.msra.mxu0 0.0
    %226 = vmatprep.subr.mxu0 0.0
    %227 = vmatpush1.msra.mxu0 0.0
    %228 = vmatprep.subr.mxu0 0.0
    %229 = vmatpush1.msra.mxu0 0.0
    %230 = vmatprep.subr.mxu0 0.0
    %231 = vmatpush1.msra.mxu0 0.0
    %232 = vmatprep.subr.mxu0 0.0
    %233 = vmatpush1.msra.mxu0 0.0
    %234 = vmatprep.mubr.f32.mxu0 0.0
    %235 = vmatmul.mubr.f32.gmra.mrb[0].mxu0 %v168
    %v236 = vpop.f32.mrb[0].mxu0
    %v237 = vadd.f32 0.0, %v236
    %v238 = vpop.f32.mrb[0].mxu0
    %v239 = vadd.f32 0.0, %v238
    %240 = vdwg.mxu0
    %v241 = vadd.f32 %v138, %v237
    %v242 = vadd.f32 %v140, %v239
    %v243 = vxor.u32 %v241, 2147483648
    %v244 = vmul.f32 %v243, 1.442695
    %v245 = vpow.pop %v244
    %v246 = vadd.f32 %v245, 1.0
    %v247 = vrcp.pop %v246
    %v248 = vmul.f32 1.0, %v247
    %v249 = vtanh.pop %v242
    %v250 = vxor.u32 %v242, 2147483648
    %v251 = vmul.f32 %v250, 1.442695
    %v252 = vpow.pop %v251
    %v253 = vadd.f32 %v252, 1.0
    %v254 = vrcp.pop %v253
    %v255 = vmul.f32 1.0, %v254
    %v256 = vmul.f32 %v248, 0.0
    %v257 = vmul.f32 %v248, %v249
    %259 = vrot.lane.b32.xlu0 %v257, 64
    %v260 = vpop.permute.xlu0 %259
    %v262 = vadd.f32 %v256, %v260
    %v263 = vtanh.pop %v262
    %v264 = vmul.f32 %v255, %v263
    %266 = vrot.lane.b32.xlu0 %v264, 64
    %v267 = vpop.permute.xlu0 %266
    %v269 = vmul.f32 %v164, %v267
    %v270 = vsub.f32 1.0, %v164
    %v271 = vmul.f32 %v270, 0.0
    %v272 = vadd.f32 %v269, %v271
    %274 = vrot.lane.b32.xlu0 %v262, 64
    %v275 = vpop.permute.xlu0 %274
    %v277 = vmul.f32 %v164, %v275
    %v278 = vadd.f32 %v277, %v271
    %v281 = vunpack.c.l.s4 1966171168
    %v282 = vunpack.c.0.s8 %v281
    %v283 = vlaneseq
    %v284 = vshrl.u32 %v283, 7
    %v285 = vsub.s32 %v282, %v284
    %v286 = vrot.slane %v269, %v285
    %v287 = vcombine.high %v286, %v286
    %v289 = vunpack.c.l.s4 1966171168
    %v290 = vunpack.c.0.s8 %v289
    %v291 = vlaneseq
    %v292 = vshrl.u32 %v291, 7
    %v293 = vsub.s32 %v290, %v292
    %v294 = vrot.slane %v286, %v293
    %v296 = vunpack.c.l.s4 1966171168
    %v297 = vunpack.c.0.s8 %v296
    %v298 = vlaneseq
    %v299 = vshrl.u32 %v298, 7
    %v300 = vsub.s32 %v297, %v299
    %v301 = vrot.slane %v287, %v300
    %vm304 = vcmask 253952
    %305 = vst.msk [vmem:[#allocation2] sm:$0x1] %vm304, %v294
    %306 = vst.msk [vmem:[#allocation2 + $0x8] sm:$0x1] %vm304, %v301
    %vm307 = vcmask 516352
    %308 = vst.msk [vmem:[#allocation2 + $0x7] sm:$0x1] %vm307, %v294
    %309 = vst.msk [vmem:[#allocation2 + $0xf] sm:$0x1] %vm307, %v301
    %v311 = vsel %vm166, %v272, 0
    %313 = vmatprep.subr.mxu0 %v149
    %314 = vmatpush1.msra.mxu0 %v148
    %315 = vmatprep.subr.mxu0 %v151
    %316 = vmatpush1.msra.mxu0 %v150
    %317 = vmatprep.subr.mxu0 %v153
    %318 = vmatpush1.msra.mxu0 %v152
    %319 = vmatprep.subr.mxu0 %v155
    %320 = vmatpush1.msra.mxu0 %v154
    %321 = vmatprep.subr.mxu0 %v157
    %322 = vmatpush1.msra.mxu0 %v156
    %323 = vmatprep.subr.mxu0 %v159
    %324 = vmatpush1.msra.mxu0 %v158
    %325 = vmatprep.subr.mxu0 %v161
    %326 = vmatpush1.msra.mxu0 %v160
    %327 = vmatprep.subr.mxu0 %v163
    %328 = vmatpush1.msra.mxu0 %v162
    %329 = vmatprep.subr.mxu0 0.0
    %330 = vmatpush1.msra.mxu0 0.0
    %331 = vmatprep.subr.mxu0 0.0
    %332 = vmatpush1.msra.mxu0 0.0
    %333 = vmatprep.subr.mxu0 0.0
    %334 = vmatpush1.msra.mxu0 0.0
    %335 = vmatprep.subr.mxu0 0.0
    %336 = vmatpush1.msra.mxu0 0.0
    %337 = vmatprep.subr.mxu0 0.0
    %338 = vmatpush1.msra.mxu0 0.0
    %339 = vmatprep.subr.mxu0 0.0
    %340 = vmatpush1.msra.mxu0 0.0
    %341 = vmatprep.subr.mxu0 0.0
    %342 = vmatpush1.msra.mxu0 0.0
    %343 = vmatprep.subr.mxu0 0.0
    %344 = vmatpush1.msra.mxu0 0.0
    %345 = vmatprep.subr.mxu0 0.0
    %346 = vmatpush1.msra.mxu0 0.0
    %347 = vmatprep.subr.mxu0 0.0
    %348 = vmatpush1.msra.mxu0 0.0
    %349 = vmatprep.subr.mxu0 0.0
    %350 = vmatpush1.msra.mxu0 0.0
    %351 = vmatprep.subr.mxu0 0.0
    %352 = vmatpush1.msra.mxu0 0.0
    %353 = vmatprep.subr.mxu0 0.0
    %354 = vmatpush1.msra.mxu0 0.0
    %355 = vmatprep.subr.mxu0 0.0
    %356 = vmatpush1.msra.mxu0 0.0
    %357 = vmatprep.subr.mxu0 0.0
    %358 = vmatpush1.msra.mxu0 0.0
    %359 = vmatprep.subr.mxu0 0.0
    %360 = vmatpush1.msra.mxu0 0.0
    %361 = vmatprep.subr.mxu0 0.0
    %362 = vmatpush1.msra.mxu0 0.0
    %363 = vmatprep.subr.mxu0 0.0
    %364 = vmatpush1.msra.mxu0 0.0
    %365 = vmatprep.subr.mxu0 0.0
    %366 = vmatpush1.msra.mxu0 0.0
    %367 = vmatprep.subr.mxu0 0.0
    %368 = vmatpush1.msra.mxu0 0.0
    %369 = vmatprep.subr.mxu0 0.0
    %370 = vmatpush1.msra.mxu0 0.0
    %371 = vmatprep.subr.mxu0 0.0
    %372 = vmatpush1.msra.mxu0 0.0
    %373 = vmatprep.subr.mxu0 0.0
    %374 = vmatpush1.msra.mxu0 0.0
    %375 = vmatprep.subr.mxu0 0.0
    %376 = vmatpush1.msra.mxu0 0.0
    %377 = vmatprep.mubr.f32.mxu0 0.0
    %378 = vmatmul.mubr.f32.gmra.mrb[0].mxu0 %v311
    %v379 = vpop.f32.mrb[0].mxu0
    %v380 = vadd.f32 0.0, %v379
    %v381 = vpop.f32.mrb[0].mxu0
    %v382 = vadd.f32 0.0, %v381
    %383 = vdwg.mxu0
    %v386 = vrot.slane %v380, 6
    %v387 = vrot.slane %v382, 6
    %v390 = vadd.f32 %v138, %v386
    %v391 = vadd.f32 %v140, %v387
    %v392 = vxor.u32 %v390, 2147483648
    %v393 = vmul.f32 %v392, 1.442695
    %v394 = vpow.pop %v393
    %v395 = vadd.f32 %v394, 1.0
    %v396 = vrcp.pop %v395
    %v397 = vmul.f32 1.0, %v396
    %v398 = vtanh.pop %v391
    %v399 = vxor.u32 %v391, 2147483648
    %v400 = vmul.f32 %v399, 1.442695
    %v401 = vpow.pop %v400
    %v402 = vadd.f32 %v401, 1.0
    %v403 = vrcp.pop %v402
    %v404 = vmul.f32 1.0, %v403
    %v406 = vrot.slane %v278, 6
    %407 = vrot.lane.b32.xlu0 %v406, 64
    %v408 = vpop.permute.xlu0 %407
    %v410 = vmul.f32 %v397, %v408
    %v411 = vmul.f32 %v397, %v398
    %413 = vrot.lane.b32.xlu0 %v411, 64
    %v414 = vpop.permute.xlu0 %413
    %v416 = vadd.f32 %v410, %v414
    %v417 = vtanh.pop %v416
    %v418 = vmul.f32 %v404, %v417
    %420 = vrot.lane.b32.xlu0 %v418, 64
    %v421 = vpop.permute.xlu0 %420
    %v423 = vmul.f32 %v164, %v421
    %v424 = vrot.slane %v272, 6
    %v426 = vmul.f32 %v270, %v424
    %v427 = vadd.f32 %v423, %v426
    %429 = vrot.lane.b32.xlu0 %v416, 64
    %v430 = vpop.permute.xlu0 %429
    %v432 = vmul.f32 %v164, %v430
    %v434 = vmul.f32 %v270, %v406
    %v435 = vadd.f32 %v432, %v434
    %v438 = vunpack.c.l.s4 1966171168
    %v439 = vunpack.c.0.s8 %v438
    %v440 = vlaneseq
    %v441 = vshrl.u32 %v440, 7
    %v442 = vsub.s32 %v439, %v441
    %v443 = vrot.slane %v423, %v442
    %v444 = vcombine.high %v443, %v443
    %v446 = vunpack.c.l.s4 1966171168
    %v447 = vunpack.c.0.s8 %v446
    %v448 = vlaneseq
    %v449 = vshrl.u32 %v448, 7
    %v450 = vsub.s32 %v447, %v449
    %v451 = vrot.slane %v443, %v450
    %v453 = vunpack.c.l.s4 1966171168
    %v454 = vunpack.c.0.s8 %v453
    %v455 = vlaneseq
    %v456 = vshrl.u32 %v455, 7
    %v457 = vsub.s32 %v454, %v456
    %v458 = vrot.slane %v444, %v457
    %v459 = vcombine.high %v451, %v451
    %v460 = vcombine.high %v458, %v458
    %463 = vst.msk [vmem:[#allocation2 + $0x1] sm:$0x1] %vm304, %v459
    %464 = vst.msk [vmem:[#allocation2 + $0x9] sm:$0x1] %vm304, %v460
    %465 = vst.msk [vmem:[#allocation2 + $0x6] sm:$0x1] %vm307, %v459
    %466 = vst.msk [vmem:[#allocation2 + $0xe] sm:$0x1] %vm307, %v460
    %v468 = vrot.slane %v427, 2
    %v469 = vsel %vm166, %v468, 0
    %471 = vmatprep.subr.mxu0 %v149
    %472 = vmatpush1.msra.mxu0 %v148
    %473 = vmatprep.subr.mxu0 %v151
    %474 = vmatpush1.msra.mxu0 %v150
    %475 = vmatprep.subr.mxu0 %v153
    %476 = vmatpush1.msra.mxu0 %v152
    %477 = vmatprep.subr.mxu0 %v155
    %478 = vmatpush1.msra.mxu0 %v154
    %479 = vmatprep.subr.mxu0 %v157
    %480 = vmatpush1.msra.mxu0 %v156
    %481 = vmatprep.subr.mxu0 %v159
    %482 = vmatpush1.msra.mxu0 %v158
    %483 = vmatprep.subr.mxu0 %v161
    %484 = vmatpush1.msra.mxu0 %v160
    %485 = vmatprep.subr.mxu0 %v163
    %486 = vmatpush1.msra.mxu0 %v162
    %487 = vmatprep.subr.mxu0 0.0
    %488 = vmatpush1.msra.mxu0 0.0
    %489 = vmatprep.subr.mxu0 0.0
    %490 = vmatpush1.msra.mxu0 0.0
    %491 = vmatprep.subr.mxu0 0.0
    %492 = vmatpush1.msra.mxu0 0.0
    %493 = vmatprep.subr.mxu0 0.0
    %494 = vmatpush1.msra.mxu0 0.0
    %495 = vmatprep.subr.mxu0 0.0
    %496 = vmatpush1.msra.mxu0 0.0
    %497 = vmatprep.subr.mxu0 0.0
    %498 = vmatpush1.msra.mxu0 0.0
    %499 = vmatprep.subr.mxu0 0.0
    %500 = vmatpush1.msra.mxu0 0.0
    %501 = vmatprep.subr.mxu0 0.0
    %502 = vmatpush1.msra.mxu0 0.0
    %503 = vmatprep.subr.mxu0 0.0
    %504 = vmatpush1.msra.mxu0 0.0
    %505 = vmatprep.subr.mxu0 0.0
    %506 = vmatpush1.msra.mxu0 0.0
    %507 = vmatprep.subr.mxu0 0.0
    %508 = vmatpush1.msra.mxu0 0.0
    %509 = vmatprep.subr.mxu0 0.0
    %510 = vmatpush1.msra.mxu0 0.0
    %511 = vmatprep.subr.mxu0 0.0
    %512 = vmatpush1.msra.mxu0 0.0
    %513 = vmatprep.subr.mxu0 0.0
    %514 = vmatpush1.msra.mxu0 0.0
    %515 = vmatprep.subr.mxu0 0.0
    %516 = vmatpush1.msra.mxu0 0.0
    %517 = vmatprep.subr.mxu0 0.0
    %518 = vmatpush1.msra.mxu0 0.0
    %519 = vmatprep.subr.mxu0 0.0
    %520 = vmatpush1.msra.mxu0 0.0
    %521 = vmatprep.subr.mxu0 0.0
    %522 = vmatpush1.msra.mxu0 0.0
    %523 = vmatprep.subr.mxu0 0.0
    %524 = vmatpush1.msra.mxu0 0.0
    %525 = vmatprep.subr.mxu0 0.0
    %526 = vmatpush1.msra.mxu0 0.0
    %527 = vmatprep.subr.mxu0 0.0
    %528 = vmatpush1.msra.mxu0 0.0
    %529 = vmatprep.subr.mxu0 0.0
    %530 = vmatpush1.msra.mxu0 0.0
    %531 = vmatprep.subr.mxu0 0.0
    %532 = vmatpush1.msra.mxu0 0.0
    %533 = vmatprep.subr.mxu0 0.0
    %534 = vmatpush1.msra.mxu0 0.0
    %535 = vmatprep.mubr.f32.mxu0 0.0
    %536 = vmatmul.mubr.f32.gmra.mrb[0].mxu0 %v469
    %v537 = vpop.f32.mrb[0].mxu0
    %v538 = vadd.f32 0.0, %v537
    %v539 = vpop.f32.mrb[0].mxu0
    %v540 = vadd.f32 0.0, %v539
    %541 = vdwg.mxu0
    %v544 = vrot.slane %v538, 4
    %v545 = vrot.slane %v540, 4
    %v548 = vadd.f32 %v138, %v544
    %v549 = vadd.f32 %v140, %v545
    %v550 = vxor.u32 %v548, 2147483648
    %v551 = vmul.f32 %v550, 1.442695
    %v552 = vpow.pop %v551
    %v553 = vadd.f32 %v552, 1.0
    %v554 = vrcp.pop %v553
    %v555 = vmul.f32 1.0, %v554
    %v556 = vtanh.pop %v549
    %v557 = vxor.u32 %v549, 2147483648
    %v558 = vmul.f32 %v557, 1.442695
    %v559 = vpow.pop %v558
    %v560 = vadd.f32 %v559, 1.0
    %v561 = vrcp.pop %v560
    %v562 = vmul.f32 1.0, %v561
    %v564 = vrot.slane %v435, 6
    %565 = vrot.lane.b32.xlu0 %v564, 64
    %v566 = vpop.permute.xlu0 %565
    %v568 = vmul.f32 %v555, %v566
    %v569 = vmul.f32 %v555, %v556
    %571 = vrot.lane.b32.xlu0 %v569, 64
    %v572 = vpop.permute.xlu0 %571
    %v574 = vadd.f32 %v568, %v572
    %v575 = vtanh.pop %v574
    %v576 = vmul.f32 %v562, %v575
    %578 = vrot.lane.b32.xlu0 %v576, 64
    %v579 = vpop.permute.xlu0 %578
    %v581 = vmul.f32 %v164, %v579
    %v582 = vrot.slane %v427, 6
    %v584 = vmul.f32 %v270, %v582
    %v585 = vadd.f32 %v581, %v584
    %587 = vrot.lane.b32.xlu0 %v574, 64
    %v588 = vpop.permute.xlu0 %587
    %v590 = vmul.f32 %v164, %v588
    %v592 = vmul.f32 %v270, %v564
    %v593 = vadd.f32 %v590, %v592
    %v595 = vcombine.high %v581, %v581
    %v597 = vunpack.c.l.s4 1966171168
    %v598 = vunpack.c.0.s8 %v597
    %v599 = vlaneseq
    %v600 = vshrl.u32 %v599, 7
    %v601 = vsub.s32 %v598, %v600
    %v602 = vrot.slane %v595, %v601
    %v603 = vcombine.high %v602, %v602
    %v605 = vunpack.c.l.s4 1966171168
    %v606 = vunpack.c.0.s8 %v605
    %v607 = vlaneseq
    %v608 = vshrl.u32 %v607, 7
    %v609 = vsub.s32 %v606, %v608
    %v610 = vrot.slane %v602, %v609
    %v612 = vunpack.c.l.s4 1966171168
    %v613 = vunpack.c.0.s8 %v612
    %v614 = vlaneseq
    %v615 = vshrl.u32 %v614, 7
    %v616 = vsub.s32 %v613, %v615
    %v617 = vrot.slane %v603, %v616
    %620 = vst.msk [vmem:[#allocation2 + $0x2] sm:$0x1] %vm304, %v610
    %621 = vst.msk [vmem:[#allocation2 + $0xa] sm:$0x1] %vm304, %v617
    %622 = vst.msk [vmem:[#allocation2 + $0x5] sm:$0x1] %vm307, %v610
    %623 = vst.msk [vmem:[#allocation2 + $0xd] sm:$0x1] %vm307, %v617
    %v625 = vrot.slane %v585, 4
    %v626 = vsel %vm166, %v625, 0
    %628 = vmatprep.subr.mxu0 %v149
    %629 = vmatpush1.msra.mxu0 %v148
    %630 = vmatprep.subr.mxu0 %v151
    %631 = vmatpush1.msra.mxu0 %v150
    %632 = vmatprep.subr.mxu0 %v153
    %633 = vmatpush1.msra.mxu0 %v152
    %634 = vmatprep.subr.mxu0 %v155
    %635 = vmatpush1.msra.mxu0 %v154
    %636 = vmatprep.subr.mxu0 %v157
    %637 = vmatpush1.msra.mxu0 %v156
    %638 = vmatprep.subr.mxu0 %v159
    %639 = vmatpush1.msra.mxu0 %v158
    %640 = vmatprep.subr.mxu0 %v161
    %641 = vmatpush1.msra.mxu0 %v160
    %642 = vmatprep.subr.mxu0 %v163
    %643 = vmatpush1.msra.mxu0 %v162
    %644 = vmatprep.subr.mxu0 0.0
    %645 = vmatpush1.msra.mxu0 0.0
    %646 = vmatprep.subr.mxu0 0.0
    %647 = vmatpush1.msra.mxu0 0.0
    %648 = vmatprep.subr.mxu0 0.0
    %649 = vmatpush1.msra.mxu0 0.0
    %650 = vmatprep.subr.mxu0 0.0
    %651 = vmatpush1.msra.mxu0 0.0
    %652 = vmatprep.subr.mxu0 0.0
    %653 = vmatpush1.msra.mxu0 0.0
    %654 = vmatprep.subr.mxu0 0.0
    %655 = vmatpush1.msra.mxu0 0.0
    %656 = vmatprep.subr.mxu0 0.0
    %657 = vmatpush1.msra.mxu0 0.0
    %658 = vmatprep.subr.mxu0 0.0
    %659 = vmatpush1.msra.mxu0 0.0
    %660 = vmatprep.subr.mxu0 0.0
    %661 = vmatpush1.msra.mxu0 0.0
    %662 = vmatprep.subr.mxu0 0.0
    %663 = vmatpush1.msra.mxu0 0.0
    %664 = vmatprep.subr.mxu0 0.0
    %665 = vmatpush1.msra.mxu0 0.0
    %666 = vmatprep.subr.mxu0 0.0
    %667 = vmatpush1.msra.mxu0 0.0
    %668 = vmatprep.subr.mxu0 0.0
    %669 = vmatpush1.msra.mxu0 0.0
    %670 = vmatprep.subr.mxu0 0.0
    %671 = vmatpush1.msra.mxu0 0.0
    %672 = vmatprep.subr.mxu0 0.0
    %673 = vmatpush1.msra.mxu0 0.0
    %674 = vmatprep.subr.mxu0 0.0
    %675 = vmatpush1.msra.mxu0 0.0
    %676 = vmatprep.subr.mxu0 0.0
    %677 = vmatpush1.msra.mxu0 0.0
    %678 = vmatprep.subr.mxu0 0.0
    %679 = vmatpush1.msra.mxu0 0.0
    %680 = vmatprep.subr.mxu0 0.0
    %681 = vmatpush1.msra.mxu0 0.0
    %682 = vmatprep.subr.mxu0 0.0
    %683 = vmatpush1.msra.mxu0 0.0
    %684 = vmatprep.subr.mxu0 0.0
    %685 = vmatpush1.msra.mxu0 0.0
    %686 = vmatprep.subr.mxu0 0.0
    %687 = vmatpush1.msra.mxu0 0.0
    %688 = vmatprep.subr.mxu0 0.0
    %689 = vmatpush1.msra.mxu0 0.0
    %690 = vmatprep.subr.mxu0 0.0
    %691 = vmatpush1.msra.mxu0 0.0
    %692 = vmatprep.mubr.f32.mxu0 0.0
    %693 = vmatmul.mubr.f32.gmra.mrb[0].mxu0 %v626
    %v694 = vpop.f32.mrb[0].mxu0
    %v695 = vadd.f32 0.0, %v694
    %v696 = vpop.f32.mrb[0].mxu0
    %v697 = vadd.f32 0.0, %v696
    %698 = vdwg.mxu0
    %v701 = vrot.slane %v695, 2
    %v702 = vrot.slane %v697, 2
    %v705 = vadd.f32 %v138, %v701
    %v706 = vadd.f32 %v140, %v702
    %v707 = vxor.u32 %v705, 2147483648
    %v708 = vmul.f32 %v707, 1.442695
    %v709 = vpow.pop %v708
    %v710 = vadd.f32 %v709, 1.0
    %v711 = vrcp.pop %v710
    %v712 = vmul.f32 1.0, %v711
    %v713 = vtanh.pop %v706
    %v714 = vxor.u32 %v706, 2147483648
    %v715 = vmul.f32 %v714, 1.442695
    %v716 = vpow.pop %v715
    %v717 = vadd.f32 %v716, 1.0
    %v718 = vrcp.pop %v717
    %v719 = vmul.f32 1.0, %v718
    %v721 = vrot.slane %v593, 6
    %722 = vrot.lane.b32.xlu0 %v721, 64
    %v723 = vpop.permute.xlu0 %722
    %v725 = vmul.f32 %v712, %v723
    %v726 = vmul.f32 %v712, %v713
    %728 = vrot.lane.b32.xlu0 %v726, 64
    %v729 = vpop.permute.xlu0 %728
    %v731 = vadd.f32 %v725, %v729
    %v732 = vtanh.pop %v731
    %v733 = vmul.f32 %v719, %v732
    %735 = vrot.lane.b32.xlu0 %v733, 64
    %v736 = vpop.permute.xlu0 %735
    %v738 = vmul.f32 %v164, %v736
    %v739 = vrot.slane %v585, 6
    %v741 = vmul.f32 %v270, %v739
    %v742 = vadd.f32 %v738, %v741
    %744 = vrot.lane.b32.xlu0 %v731, 64
    %v745 = vpop.permute.xlu0 %744
    %v747 = vmul.f32 %v164, %v745
    %v749 = vmul.f32 %v270, %v721
    %v750 = vadd.f32 %v747, %v749
    %v752 = vcombine.high %v738, %v738
    %v754 = vunpack.c.l.s4 1966171168
    %v755 = vunpack.c.0.s8 %v754
    %v756 = vlaneseq
    %v757 = vshrl.u32 %v756, 7
    %v758 = vsub.s32 %v755, %v757
    %v759 = vrot.slane %v752, %v758
    %v760 = vcombine.high %v759, %v759
    %v762 = vunpack.c.l.s4 1966171168
    %v763 = vunpack.c.0.s8 %v762
    %v764 = vlaneseq
    %v765 = vshrl.u32 %v764, 7
    %v766 = vsub.s32 %v763, %v765
    %v767 = vrot.slane %v759, %v766
    %v769 = vunpack.c.l.s4 1966171168
    %v770 = vunpack.c.0.s8 %v769
    %v771 = vlaneseq
    %v772 = vshrl.u32 %v771, 7
    %v773 = vsub.s32 %v770, %v772
    %v774 = vrot.slane %v760, %v773
    %v775 = vcombine.high %v767, %v767
    %v776 = vcombine.high %v774, %v774
    %779 = vst.msk [vmem:[#allocation2 + $0x3] sm:$0x1] %vm304, %v775
    %780 = vst.msk [vmem:[#allocation2 + $0xb] sm:$0x1] %vm304, %v776
    %781 = vst.msk [vmem:[#allocation2 + $0x4] sm:$0x1] %vm307, %v775
    %782 = vst.msk [vmem:[#allocation2 + $0xc] sm:$0x1] %vm307, %v776
    %v784 = vrot.slane %v742, 6
    %v785 = vsel %vm166, %v784, 0
    %787 = vmatprep.subr.mxu0 %v149
    %788 = vmatpush1.msra.mxu0 %v148
    %789 = vmatprep.subr.mxu0 %v151
    %790 = vmatpush1.msra.mxu0 %v150
    %791 = vmatprep.subr.mxu0 %v153
    %792 = vmatpush1.msra.mxu0 %v152
    %793 = vmatprep.subr.mxu0 %v155
    %794 = vmatpush1.msra.mxu0 %v154
    %795 = vmatprep.subr.mxu0 %v157
    %796 = vmatpush1.msra.mxu0 %v156
    %797 = vmatprep.subr.mxu0 %v159
    %798 = vmatpush1.msra.mxu0 %v158
    %799 = vmatprep.subr.mxu0 %v161
    %800 = vmatpush1.msra.mxu0 %v160
    %801 = vmatprep.subr.mxu0 %v163
    %802 = vmatpush1.msra.mxu0 %v162
    %803 = vmatprep.subr.mxu0 0.0
    %804 = vmatpush1.msra.mxu0 0.0
    %805 = vmatprep.subr.mxu0 0.0
    %806 = vmatpush1.msra.mxu0 0.0
    %807 = vmatprep.subr.mxu0 0.0
    %808 = vmatpush1.msra.mxu0 0.0
    %809 = vmatprep.subr.mxu0 0.0
    %810 = vmatpush1.msra.mxu0 0.0
    %811 = vmatprep.subr.mxu0 0.0
    %812 = vmatpush1.msra.mxu0 0.0
    %813 = vmatprep.subr.mxu0 0.0
    %814 = vmatpush1.msra.mxu0 0.0
    %815 = vmatprep.subr.mxu0 0.0
    %816 = vmatpush1.msra.mxu0 0.0
    %817 = vmatprep.subr.mxu0 0.0
    %818 = vmatpush1.msra.mxu0 0.0
    %819 = vmatprep.subr.mxu0 0.0
    %820 = vmatpush1.msra.mxu0 0.0
    %821 = vmatprep.subr.mxu0 0.0
    %822 = vmatpush1.msra.mxu0 0.0
    %823 = vmatprep.subr.mxu0 0.0
    %824 = vmatpush1.msra.mxu0 0.0
    %825 = vmatprep.subr.mxu0 0.0
    %826 = vmatpush1.msra.mxu0 0.0
    %827 = vmatprep.subr.mxu0 0.0
    %828 = vmatpush1.msra.mxu0 0.0
    %829 = vmatprep.subr.mxu0 0.0
    %830 = vmatpush1.msra.mxu0 0.0
    %831 = vmatprep.subr.mxu0 0.0
    %832 = vmatpush1.msra.mxu0 0.0
    %833 = vmatprep.subr.mxu0 0.0
    %834 = vmatpush1.msra.mxu0 0.0
    %835 = vmatprep.subr.mxu0 0.0
    %836 = vmatpush1.msra.mxu0 0.0
    %837 = vmatprep.subr.mxu0 0.0
    %838 = vmatpush1.msra.mxu0 0.0
    %839 = vmatprep.subr.mxu0 0.0
    %840 = vmatpush1.msra.mxu0 0.0
    %841 = vmatprep.subr.mxu0 0.0
    %842 = vmatpush1.msra.mxu0 0.0
    %843 = vmatprep.subr.mxu0 0.0
    %844 = vmatpush1.msra.mxu0 0.0
    %845 = vmatprep.subr.mxu0 0.0
    %846 = vmatpush1.msra.mxu0 0.0
    %847 = vmatprep.subr.mxu0 0.0
    %848 = vmatpush1.msra.mxu0 0.0
    %849 = vmatprep.subr.mxu0 0.0
    %850 = vmatpush1.msra.mxu0 0.0
    %851 = vmatprep.mubr.f32.mxu0 0.0
    %852 = vmatmul.mubr.f32.gmra.mrb[0].mxu0 %v785
    %v853 = vpop.f32.mrb[0].mxu0
    %v854 = vadd.f32 0.0, %v853
    %v855 = vpop.f32.mrb[0].mxu0
    %v856 = vadd.f32 0.0, %v855
    %857 = vdwg.mxu0
    %v858 = vadd.f32 %v144, %v854
    %v859 = vadd.f32 %v146, %v856
    %v860 = vxor.u32 %v858, 2147483648
    %v861 = vmul.f32 %v860, 1.442695
    %v862 = vpow.pop %v861
    %v863 = vadd.f32 %v862, 1.0
    %v864 = vrcp.pop %v863
    %v865 = vmul.f32 1.0, %v864
    %v866 = vtanh.pop %v859
    %v867 = vxor.u32 %v859, 2147483648
    %v868 = vmul.f32 %v867, 1.442695
    %v869 = vpow.pop %v868
    %v870 = vadd.f32 %v869, 1.0
    %v871 = vrcp.pop %v870
    %v872 = vmul.f32 1.0, %v871
    %v874 = vrot.slane %v750, 6
    %875 = vrot.lane.b32.xlu0 %v874, 64
    %v876 = vpop.permute.xlu0 %875
    %v878 = vmul.f32 %v865, %v876
    %v879 = vmul.f32 %v865, %v866
    %881 = vrot.lane.b32.xlu0 %v879, 64
    %v882 = vpop.permute.xlu0 %881
    %v884 = vadd.f32 %v878, %v882
    %v885 = vtanh.pop %v884
    %v886 = vmul.f32 %v872, %v885
    %888 = vrot.lane.b32.xlu0 %v886, 64
    %v889 = vpop.permute.xlu0 %888
    %v891 = vmul.f32 %v165, %v889
    %v892 = vsub.f32 1.0, %v165
    %v894 = vmul.f32 %v892, %v784
    %v895 = vadd.f32 %v891, %v894
    %897 = vrot.lane.b32.xlu0 %v884, 64
    %v898 = vpop.permute.xlu0 %897
    %v900 = vmul.f32 %v165, %v898
    %v902 = vmul.f32 %v892, %v874
    %v903 = vadd.f32 %v900, %v902
    %v906 = vunpack.c.l.s4 1966171168
    %v907 = vunpack.c.0.s8 %v906
    %v908 = vlaneseq
    %v909 = vshrl.u32 %v908, 7
    %v910 = vsub.s32 %v907, %v909
    %v911 = vrot.slane %v891, %v910
    %v912 = vcombine.high %v911, %v911
    %v914 = vunpack.c.l.s4 1966171168
    %v915 = vunpack.c.0.s8 %v914
    %v916 = vlaneseq
    %v917 = vshrl.u32 %v916, 7
    %v918 = vsub.s32 %v915, %v917
    %v919 = vrot.slane %v911, %v918
    %v921 = vunpack.c.l.s4 1966171168
    %v922 = vunpack.c.0.s8 %v921
    %v923 = vlaneseq
    %v924 = vshrl.u32 %v923, 7
    %v925 = vsub.s32 %v922, %v924
    %v926 = vrot.slane %v912, %v925
    %929 = vst.msk [vmem:[#allocation2 + $0x4] sm:$0x1] %vm304, %v919
    %930 = vst.msk [vmem:[#allocation2 + $0xc] sm:$0x1] %vm304, %v926
    %931 = vst.msk [vmem:[#allocation2 + $0x3] sm:$0x1] %vm307, %v919
    %932 = vst.msk [vmem:[#allocation2 + $0xb] sm:$0x1] %vm307, %v926
    %v934 = vsel %vm166, %v895, 0
    %936 = vmatprep.subr.mxu0 %v149
    %937 = vmatpush1.msra.mxu0 %v148
    %938 = vmatprep.subr.mxu0 %v151
    %939 = vmatpush1.msra.mxu0 %v150
    %940 = vmatprep.subr.mxu0 %v153
    %941 = vmatpush1.msra.mxu0 %v152
    %942 = vmatprep.subr.mxu0 %v155
    %943 = vmatpush1.msra.mxu0 %v154
    %944 = vmatprep.subr.mxu0 %v157
    %945 = vmatpush1.msra.mxu0 %v156
    %946 = vmatprep.subr.mxu0 %v159
    %947 = vmatpush1.msra.mxu0 %v158
    %948 = vmatprep.subr.mxu0 %v161
    %949 = vmatpush1.msra.mxu0 %v160
    %950 = vmatprep.subr.mxu0 %v163
    %951 = vmatpush1.msra.mxu0 %v162
    %952 = vmatprep.subr.mxu0 0.0
    %953 = vmatpush1.msra.mxu0 0.0
    %954 = vmatprep.subr.mxu0 0.0
    %955 = vmatpush1.msra.mxu0 0.0
    %956 = vmatprep.subr.mxu0 0.0
    %957 = vmatpush1.msra.mxu0 0.0
    %958 = vmatprep.subr.mxu0 0.0
    %959 = vmatpush1.msra.mxu0 0.0
    %960 = vmatprep.subr.mxu0 0.0
    %961 = vmatpush1.msra.mxu0 0.0
    %962 = vmatprep.subr.mxu0 0.0
    %963 = vmatpush1.msra.mxu0 0.0
    %964 = vmatprep.subr.mxu0 0.0
    %965 = vmatpush1.msra.mxu0 0.0
    %966 = vmatprep.subr.mxu0 0.0
    %967 = vmatpush1.msra.mxu0 0.0
    %968 = vmatprep.subr.mxu0 0.0
    %969 = vmatpush1.msra.mxu0 0.0
    %970 = vmatprep.subr.mxu0 0.0
    %971 = vmatpush1.msra.mxu0 0.0
    %972 = vmatprep.subr.mxu0 0.0
    %973 = vmatpush1.msra.mxu0 0.0
    %974 = vmatprep.subr.mxu0 0.0
    %975 = vmatpush1.msra.mxu0 0.0
    %976 = vmatprep.subr.mxu0 0.0
    %977 = vmatpush1.msra.mxu0 0.0
    %978 = vmatprep.subr.mxu0 0.0
    %979 = vmatpush1.msra.mxu0 0.0
    %980 = vmatprep.subr.mxu0 0.0
    %981 = vmatpush1.msra.mxu0 0.0
    %982 = vmatprep.subr.mxu0 0.0
    %983 = vmatpush1.msra.mxu0 0.0
    %984 = vmatprep.subr.mxu0 0.0
    %985 = vmatpush1.msra.mxu0 0.0
    %986 = vmatprep.subr.mxu0 0.0
    %987 = vmatpush1.msra.mxu0 0.0
    %988 = vmatprep.subr.mxu0 0.0
    %989 = vmatpush1.msra.mxu0 0.0
    %990 = vmatprep.subr.mxu0 0.0
    %991 = vmatpush1.msra.mxu0 0.0
    %992 = vmatprep.subr.mxu0 0.0
    %993 = vmatpush1.msra.mxu0 0.0
    %994 = vmatprep.subr.mxu0 0.0
    %995 = vmatpush1.msra.mxu0 0.0
    %996 = vmatprep.subr.mxu0 0.0
    %997 = vmatpush1.msra.mxu0 0.0
    %998 = vmatprep.subr.mxu0 0.0
    %999 = vmatpush1.msra.mxu0 0.0
    %1000 = vmatprep.mubr.f32.mxu0 0.0
    %1001 = vmatmul.mubr.f32.gmra.mrb[0].mxu0 %v934
    %v1002 = vpop.f32.mrb[0].mxu0
    %v1003 = vadd.f32 0.0, %v1002
    %v1004 = vpop.f32.mrb[0].mxu0
    %v1005 = vadd.f32 0.0, %v1004
    %1006 = vdwg.mxu0
    %v1009 = vrot.slane %v1003, 6
    %v1010 = vrot.slane %v1005, 6
    %v1013 = vadd.f32 %v144, %v1009
    %v1014 = vadd.f32 %v146, %v1010
    %v1015 = vxor.u32 %v1013, 2147483648
    %v1016 = vmul.f32 %v1015, 1.442695
    %v1017 = vpow.pop %v1016
    %v1018 = vadd.f32 %v1017, 1.0
    %v1019 = vrcp.pop %v1018
    %v1020 = vmul.f32 1.0, %v1019
    %v1021 = vtanh.pop %v1014
    %v1022 = vxor.u32 %v1014, 2147483648
    %v1023 = vmul.f32 %v1022, 1.442695
    %v1024 = vpow.pop %v1023
    %v1025 = vadd.f32 %v1024, 1.0
    %v1026 = vrcp.pop %v1025
    %v1027 = vmul.f32 1.0, %v1026
    %v1029 = vrot.slane %v903, 6
    %1030 = vrot.lane.b32.xlu0 %v1029, 64
    %v1031 = vpop.permute.xlu0 %1030
    %v1033 = vmul.f32 %v1020, %v1031
    %v1034 = vmul.f32 %v1020, %v1021
    %1036 = vrot.lane.b32.xlu0 %v1034, 64
    %v1037 = vpop.permute.xlu0 %1036
    %v1039 = vadd.f32 %v1033, %v1037
    %v1040 = vtanh.pop %v1039
    %v1041 = vmul.f32 %v1027, %v1040
    %1043 = vrot.lane.b32.xlu0 %v1041, 64
    %v1044 = vpop.permute.xlu0 %1043
    %v1046 = vmul.f32 %v165, %v1044
    %v1047 = vrot.slane %v895, 6
    %v1049 = vmul.f32 %v892, %v1047
    %v1050 = vadd.f32 %v1046, %v1049
    %1052 = vrot.lane.b32.xlu0 %v1039, 64
    %v1053 = vpop.permute.xlu0 %1052
    %v1055 = vmul.f32 %v165, %v1053
    %v1057 = vmul.f32 %v892, %v1029
    %v1058 = vadd.f32 %v1055, %v1057
    %v1061 = vunpack.c.l.s4 1966171168
    %v1062 = vunpack.c.0.s8 %v1061
    %v1063 = vlaneseq
    %v1064 = vshrl.u32 %v1063, 7
    %v1065 = vsub.s32 %v1062, %v1064
    %v1066 = vrot.slane %v1046, %v1065
    %v1067 = vcombine.high %v1066, %v1066
    %v1069 = vunpack.c.l.s4 1966171168
    %v1070 = vunpack.c.0.s8 %v1069
    %v1071 = vlaneseq
    %v1072 = vshrl.u32 %v1071, 7
    %v1073 = vsub.s32 %v1070, %v1072
    %v1074 = vrot.slane %v1066, %v1073
    %v1076 = vunpack.c.l.s4 1966171168
    %v1077 = vunpack.c.0.s8 %v1076
    %v1078 = vlaneseq
    %v1079 = vshrl.u32 %v1078, 7
    %v1080 = vsub.s32 %v1077, %v1079
    %v1081 = vrot.slane %v1067, %v1080
    %v1082 = vcombine.high %v1074, %v1074
    %v1083 = vcombine.high %v1081, %v1081
    %1086 = vst.msk [vmem:[#allocation2 + $0x5] sm:$0x1] %vm304, %v1082
    %1087 = vst.msk [vmem:[#allocation2 + $0xd] sm:$0x1] %vm304, %v1083
    %1088 = vst.msk [vmem:[#allocation2 + $0x2] sm:$0x1] %vm307, %v1082
    %1089 = vst.msk [vmem:[#allocation2 + $0xa] sm:$0x1] %vm307, %v1083
    %v1091 = vrot.slane %v1050, 2
    %v1092 = vsel %vm166, %v1091, 0
    %1094 = vmatprep.subr.mxu0 %v149
    %1095 = vmatpush1.msra.mxu0 %v148
    %1096 = vmatprep.subr.mxu0 %v151
    %1097 = vmatpush1.msra.mxu0 %v150
    %1098 = vmatprep.subr.mxu0 %v153
    %1099 = vmatpush1.msra.mxu0 %v152
    %1100 = vmatprep.subr.mxu0 %v155
    %1101 = vmatpush1.msra.mxu0 %v154
    %1102 = vmatprep.subr.mxu0 %v157
    %1103 = vmatpush1.msra.mxu0 %v156
    %1104 = vmatprep.subr.mxu0 %v159
    %1105 = vmatpush1.msra.mxu0 %v158
    %1106 = vmatprep.subr.mxu0 %v161
    %1107 = vmatpush1.msra.mxu0 %v160
    %1108 = vmatprep.subr.mxu0 %v163
    %1109 = vmatpush1.msra.mxu0 %v162
    %1110 = vmatprep.subr.mxu0 0.0
    %1111 = vmatpush1.msra.mxu0 0.0
    %1112 = vmatprep.subr.mxu0 0.0
    %1113 = vmatpush1.msra.mxu0 0.0
    %1114 = vmatprep.subr.mxu0 0.0
    %1115 = vmatpush1.msra.mxu0 0.0
    %1116 = vmatprep.subr.mxu0 0.0
    %1117 = vmatpush1.msra.mxu0 0.0
    %1118 = vmatprep.subr.mxu0 0.0
    %1119 = vmatpush1.msra.mxu0 0.0
    %1120 = vmatprep.subr.mxu0 0.0
    %1121 = vmatpush1.msra.mxu0 0.0
    %1122 = vmatprep.subr.mxu0 0.0
    %1123 = vmatpush1.msra.mxu0 0.0
    %1124 = vmatprep.subr.mxu0 0.0
    %1125 = vmatpush1.msra.mxu0 0.0
    %1126 = vmatprep.subr.mxu0 0.0
    %1127 = vmatpush1.msra.mxu0 0.0
    %1128 = vmatprep.subr.mxu0 0.0
    %1129 = vmatpush1.msra.mxu0 0.0
    %1130 = vmatprep.subr.mxu0 0.0
    %1131 = vmatpush1.msra.mxu0 0.0
    %1132 = vmatprep.subr.mxu0 0.0
    %1133 = vmatpush1.msra.mxu0 0.0
    %1134 = vmatprep.subr.mxu0 0.0
    %1135 = vmatpush1.msra.mxu0 0.0
    %1136 = vmatprep.subr.mxu0 0.0
    %1137 = vmatpush1.msra.mxu0 0.0
    %1138 = vmatprep.subr.mxu0 0.0
    %1139 = vmatpush1.msra.mxu0 0.0
    %1140 = vmatprep.subr.mxu0 0.0
    %1141 = vmatpush1.msra.mxu0 0.0
    %1142 = vmatprep.subr.mxu0 0.0
    %1143 = vmatpush1.msra.mxu0 0.0
    %1144 = vmatprep.subr.mxu0 0.0
    %1145 = vmatpush1.msra.mxu0 0.0
    %1146 = vmatprep.subr.mxu0 0.0
    %1147 = vmatpush1.msra.mxu0 0.0
    %1148 = vmatprep.subr.mxu0 0.0
    %1149 = vmatpush1.msra.mxu0 0.0
    %1150 = vmatprep.subr.mxu0 0.0
    %1151 = vmatpush1.msra.mxu0 0.0
    %1152 = vmatprep.subr.mxu0 0.0
    %1153 = vmatpush1.msra.mxu0 0.0
    %1154 = vmatprep.subr.mxu0 0.0
    %1155 = vmatpush1.msra.mxu0 0.0
    %1156 = vmatprep.subr.mxu0 0.0
    %1157 = vmatpush1.msra.mxu0 0.0
    %1158 = vmatprep.mubr.f32.mxu0 0.0
    %1159 = vmatmul.mubr.f32.gmra.mrb[0].mxu0 %v1092
    %v1160 = vpop.f32.mrb[0].mxu0
    %v1161 = vadd.f32 0.0, %v1160
    %v1162 = vpop.f32.mrb[0].mxu0
    %v1163 = vadd.f32 0.0, %v1162
    %1164 = vdwg.mxu0
    %v1167 = vrot.slane %v1161, 4
    %v1168 = vrot.slane %v1163, 4
    %v1171 = vadd.f32 %v144, %v1167
    %v1172 = vadd.f32 %v146, %v1168
    %v1173 = vxor.u32 %v1171, 2147483648
    %v1174 = vmul.f32 %v1173, 1.442695
    %v1175 = vpow.pop %v1174
    %v1176 = vadd.f32 %v1175, 1.0
    %v1177 = vrcp.pop %v1176
    %v1178 = vmul.f32 1.0, %v1177
    %v1179 = vtanh.pop %v1172
    %v1180 = vxor.u32 %v1172, 2147483648
    %v1181 = vmul.f32 %v1180, 1.442695
    %v1182 = vpow.pop %v1181
    %v1183 = vadd.f32 %v1182, 1.0
    %v1184 = vrcp.pop %v1183
    %v1185 = vmul.f32 1.0, %v1184
    %v1187 = vrot.slane %v1058, 6
    %1188 = vrot.lane.b32.xlu0 %v1187, 64
    %v1189 = vpop.permute.xlu0 %1188
    %v1191 = vmul.f32 %v1178, %v1189
    %v1192 = vmul.f32 %v1178, %v1179
    %1194 = vrot.lane.b32.xlu0 %v1192, 64
    %v1195 = vpop.permute.xlu0 %1194
    %v1197 = vadd.f32 %v1191, %v1195
    %v1198 = vtanh.pop %v1197
    %v1199 = vmul.f32 %v1185, %v1198
    %1201 = vrot.lane.b32.xlu0 %v1199, 64
    %v1202 = vpop.permute.xlu0 %1201
    %v1204 = vmul.f32 %v165, %v1202
    %v1205 = vrot.slane %v1050, 6
    %v1207 = vmul.f32 %v892, %v1205
    %v1208 = vadd.f32 %v1204, %v1207
    %1210 = vrot.lane.b32.xlu0 %v1197, 64
    %v1211 = vpop.permute.xlu0 %1210
    %v1213 = vmul.f32 %v165, %v1211
    %v1215 = vmul.f32 %v892, %v1187
    %v1216 = vadd.f32 %v1213, %v1215
    %v1218 = vcombine.high %v1204, %v1204
    %v1220 = vunpack.c.l.s4 1966171168
    %v1221 = vunpack.c.0.s8 %v1220
    %v1222 = vlaneseq
    %v1223 = vshrl.u32 %v1222, 7
    %v1224 = vsub.s32 %v1221, %v1223
    %v1225 = vrot.slane %v1218, %v1224
    %v1226 = vcombine.high %v1225, %v1225
    %v1228 = vunpack.c.l.s4 1966171168
    %v1229 = vunpack.c.0.s8 %v1228
    %v1230 = vlaneseq
    %v1231 = vshrl.u32 %v1230, 7
    %v1232 = vsub.s32 %v1229, %v1231
    %v1233 = vrot.slane %v1225, %v1232
    %v1235 = vunpack.c.l.s4 1966171168
    %v1236 = vunpack.c.0.s8 %v1235
    %v1237 = vlaneseq
    %v1238 = vshrl.u32 %v1237, 7
    %v1239 = vsub.s32 %v1236, %v1238
    %v1240 = vrot.slane %v1226, %v1239
    %1243 = vst.msk [vmem:[#allocation2 + $0x6] sm:$0x1] %vm304, %v1233
    %1244 = vst.msk [vmem:[#allocation2 + $0xe] sm:$0x1] %vm304, %v1240
    %1245 = vst.msk [vmem:[#allocation2 + $0x1] sm:$0x1] %vm307, %v1233
    %1246 = vst.msk [vmem:[#allocation2 + $0x9] sm:$0x1] %vm307, %v1240
    %v1248 = vrot.slane %v1208, 4
    %v1249 = vsel %vm166, %v1248, 0
    %1251 = vmatprep.subr.mxu0 %v149
    %1252 = vmatpush1.msra.mxu0 %v148
    %1253 = vmatprep.subr.mxu0 %v151
    %1254 = vmatpush1.msra.mxu0 %v150
    %1255 = vmatprep.subr.mxu0 %v153
    %1256 = vmatpush1.msra.mxu0 %v152
    %1257 = vmatprep.subr.mxu0 %v155
    %1258 = vmatpush1.msra.mxu0 %v154
    %1259 = vmatprep.subr.mxu0 %v157
    %1260 = vmatpush1.msra.mxu0 %v156
    %1261 = vmatprep.subr.mxu0 %v159
    %1262 = vmatpush1.msra.mxu0 %v158
    %1263 = vmatprep.subr.mxu0 %v161
    %1264 = vmatpush1.msra.mxu0 %v160
    %1265 = vmatprep.subr.mxu0 %v163
    %1266 = vmatpush1.msra.mxu0 %v162
    %1267 = vmatprep.subr.mxu0 0.0
    %1268 = vmatpush1.msra.mxu0 0.0
    %1269 = vmatprep.subr.mxu0 0.0
    %1270 = vmatpush1.msra.mxu0 0.0
    %1271 = vmatprep.subr.mxu0 0.0
    %1272 = vmatpush1.msra.mxu0 0.0
    %1273 = vmatprep.subr.mxu0 0.0
    %1274 = vmatpush1.msra.mxu0 0.0
    %1275 = vmatprep.subr.mxu0 0.0
    %1276 = vmatpush1.msra.mxu0 0.0
    %1277 = vmatprep.subr.mxu0 0.0
    %1278 = vmatpush1.msra.mxu0 0.0
    %1279 = vmatprep.subr.mxu0 0.0
    %1280 = vmatpush1.msra.mxu0 0.0
    %1281 = vmatprep.subr.mxu0 0.0
    %1282 = vmatpush1.msra.mxu0 0.0
    %1283 = vmatprep.subr.mxu0 0.0
    %1284 = vmatpush1.msra.mxu0 0.0
    %1285 = vmatprep.subr.mxu0 0.0
    %1286 = vmatpush1.msra.mxu0 0.0
    %1287 = vmatprep.subr.mxu0 0.0
    %1288 = vmatpush1.msra.mxu0 0.0
    %1289 = vmatprep.subr.mxu0 0.0
    %1290 = vmatpush1.msra.mxu0 0.0
    %1291 = vmatprep.subr.mxu0 0.0
    %1292 = vmatpush1.msra.mxu0 0.0
    %1293 = vmatprep.subr.mxu0 0.0
    %1294 = vmatpush1.msra.mxu0 0.0
    %1295 = vmatprep.subr.mxu0 0.0
    %1296 = vmatpush1.msra.mxu0 0.0
    %1297 = vmatprep.subr.mxu0 0.0
    %1298 = vmatpush1.msra.mxu0 0.0
    %1299 = vmatprep.subr.mxu0 0.0
    %1300 = vmatpush1.msra.mxu0 0.0
    %1301 = vmatprep.subr.mxu0 0.0
    %1302 = vmatpush1.msra.mxu0 0.0
    %1303 = vmatprep.subr.mxu0 0.0
    %1304 = vmatpush1.msra.mxu0 0.0
    %1305 = vmatprep.subr.mxu0 0.0
    %1306 = vmatpush1.msra.mxu0 0.0
    %1307 = vmatprep.subr.mxu0 0.0
    %1308 = vmatpush1.msra.mxu0 0.0
    %1309 = vmatprep.subr.mxu0 0.0
    %1310 = vmatpush1.msra.mxu0 0.0
    %1311 = vmatprep.subr.mxu0 0.0
    %1312 = vmatpush1.msra.mxu0 0.0
    %1313 = vmatprep.subr.mxu0 0.0
    %1314 = vmatpush1.msra.mxu0 0.0
    %1315 = vmatprep.mubr.f32.mxu0 0.0
    %1316 = vmatmul.mubr.f32.gmra.mrb[0].mxu0 %v1249
    %v1317 = vpop.f32.mrb[0].mxu0
    %v1318 = vadd.f32 0.0, %v1317
    %v1319 = vpop.f32.mrb[0].mxu0
    %v1320 = vadd.f32 0.0, %v1319
    %1321 = vdwg.mxu0
    %v1324 = vrot.slane %v1318, 2
    %v1325 = vrot.slane %v1320, 2
    %v1328 = vadd.f32 %v144, %v1324
    %v1329 = vadd.f32 %v146, %v1325
    %v1330 = vxor.u32 %v1328, 2147483648
    %v1331 = vmul.f32 %v1330, 1.442695
    %v1332 = vpow.pop %v1331
    %v1333 = vadd.f32 %v1332, 1.0
    %v1334 = vrcp.pop %v1333
    %v1335 = vmul.f32 1.0, %v1334
    %v1336 = vtanh.pop %v1329
    %v1337 = vxor.u32 %v1329, 2147483648
    %v1338 = vmul.f32 %v1337, 1.442695
    %v1339 = vpow.pop %v1338
    %v1340 = vadd.f32 %v1339, 1.0
    %v1341 = vrcp.pop %v1340
    %v1342 = vmul.f32 1.0, %v1341
    %v1344 = vrot.slane %v1216, 6
    %1345 = vrot.lane.b32.xlu0 %v1344, 64
    %v1346 = vpop.permute.xlu0 %1345
    %v1348 = vmul.f32 %v1335, %v1346
    %v1349 = vmul.f32 %v1335, %v1336
    %1351 = vrot.lane.b32.xlu0 %v1349, 64
    %v1352 = vpop.permute.xlu0 %1351
    %v1354 = vadd.f32 %v1348, %v1352
    %v1355 = vtanh.pop %v1354
    %v1356 = vmul.f32 %v1342, %v1355
    %1358 = vrot.lane.b32.xlu0 %v1356, 64
    %v1359 = vpop.permute.xlu0 %1358
    %v1361 = vmul.f32 %v165, %v1359
    %v1363 = vcombine.high %v1361, %v1361
    %v1365 = vunpack.c.l.s4 1966171168
    %v1366 = vunpack.c.0.s8 %v1365
    %v1367 = vlaneseq
    %v1368 = vshrl.u32 %v1367, 7
    %v1369 = vsub.s32 %v1366, %v1368
    %v1370 = vrot.slane %v1363, %v1369
    %v1371 = vcombine.high %v1370, %v1370
    %v1373 = vunpack.c.l.s4 1966171168
    %v1374 = vunpack.c.0.s8 %v1373
    %v1375 = vlaneseq
    %v1376 = vshrl.u32 %v1375, 7
    %v1377 = vsub.s32 %v1374, %v1376
    %v1378 = vrot.slane %v1370, %v1377
    %v1380 = vunpack.c.l.s4 1966171168
    %v1381 = vunpack.c.0.s8 %v1380
    %v1382 = vlaneseq
    %v1383 = vshrl.u32 %v1382, 7
    %v1384 = vsub.s32 %v1381, %v1383
    %v1385 = vrot.slane %v1371, %v1384
    %v1386 = vcombine.high %v1378, %v1378
    %v1387 = vcombine.high %v1385, %v1385
    %1390 = vst.msk [vmem:[#allocation2 + $0x7] sm:$0x1] %vm304, %v1386
    %1391 = vst.msk [vmem:[#allocation2 + $0xf] sm:$0x1] %vm304, %v1387
    %1392 = vst.msk [vmem:[#allocation2] sm:$0x1] %vm307, %v1386
    %1393 = vst.msk [vmem:[#allocation2 + $0x8] sm:$0x1] %vm307, %v1387
    %v1394 = vld [vmem:[#allocation2] sm:$0xff]
    %v1395 = vld [vmem:[#allocation2 + $0x8] sm:$0xff]
    %v1396 = vld [vmem:[%s6] sm:$0xff]
    %v1397 = vld [vmem:[%s6 + $0x8] sm:$0xff]
    %v1398 = vld [vmem:[%s6 + $0x10] sm:$0xff]
    %v1399 = vld [vmem:[%s6 + $0x18] sm:$0xff]
    %v1400 = vld [vmem:[%s6 + $0x20] sm:$0xff]
    %v1401 = vld [vmem:[%s6 + $0x28] sm:$0xff]
    %v1402 = vld [vmem:[%s6 + $0x30] sm:$0xff]
    %v1403 = vld [vmem:[%s6 + $0x38] sm:$0xff]
    %v1404 = vld [vmem:[%s7] sm:$0x1]
    %v1406 = vlaneseq
    %v1407 = vshrl.u32 %v1406, 7
    %v1408 = vsub.s32 0, %v1407
    %v1409 = vrot.slane %v1404, %v1408
    %v1412 = vsel %vm166, %v1394, 0
    %v1415 = vsel %vm166, %v1395, 0
    %1417 = vmatprep.subr.mxu0 0.0
    %1418 = vmatpush1.msra.mxu0 %v1396
    %1419 = vmatprep.subr.mxu0 0.0
    %1420 = vmatpush1.msra.mxu0 %v1397
    %1421 = vmatprep.subr.mxu0 0.0
    %1422 = vmatpush1.msra.mxu0 %v1398
    %1423 = vmatprep.subr.mxu0 0.0
    %1424 = vmatpush1.msra.mxu0 %v1399
    %1425 = vmatprep.subr.mxu0 0.0
    %1426 = vmatpush1.msra.mxu0 %v1400
    %1427 = vmatprep.subr.mxu0 0.0
    %1428 = vmatpush1.msra.mxu0 %v1401
    %1429 = vmatprep.subr.mxu0 0.0
    %1430 = vmatpush1.msra.mxu0 %v1402
    %1431 = vmatprep.subr.mxu0 0.0
    %1432 = vmatpush1.msra.mxu0 %v1403
    %1433 = vmatprep.subr.mxu0 0.0
    %1434 = vmatpush1.msra.mxu0 0.0
    %1435 = vmatprep.subr.mxu0 0.0
    %1436 = vmatpush1.msra.mxu0 0.0
    %1437 = vmatprep.subr.mxu0 0.0
    %1438 = vmatpush1.msra.mxu0 0.0
    %1439 = vmatprep.subr.mxu0 0.0
    %1440 = vmatpush1.msra.mxu0 0.0
    %1441 = vmatprep.subr.mxu0 0.0
    %1442 = vmatpush1.msra.mxu0 0.0
    %1443 = vmatprep.subr.mxu0 0.0
    %1444 = vmatpush1.msra.mxu0 0.0
    %1445 = vmatprep.subr.mxu0 0.0
    %1446 = vmatpush1.msra.mxu0 0.0
    %1447 = vmatprep.subr.mxu0 0.0
    %1448 = vmatpush1.msra.mxu0 0.0
    %1449 = vmatprep.subr.mxu0 0.0
    %1450 = vmatpush1.msra.mxu0 0.0
    %1451 = vmatprep.subr.mxu0 0.0
    %1452 = vmatpush1.msra.mxu0 0.0
    %1453 = vmatprep.subr.mxu0 0.0
    %1454 = vmatpush1.msra.mxu0 0.0
    %1455 = vmatprep.subr.mxu0 0.0
    %1456 = vmatpush1.msra.mxu0 0.0
    %1457 = vmatprep.subr.mxu0 0.0
    %1458 = vmatpush1.msra.mxu0 0.0
    %1459 = vmatprep.subr.mxu0 0.0
    %1460 = vmatpush1.msra.mxu0 0.0
    %1461 = vmatprep.subr.mxu0 0.0
    %1462 = vmatpush1.msra.mxu0 0.0
    %1463 = vmatprep.subr.mxu0 0.0
    %1464 = vmatpush1.msra.mxu0 0.0
    %1465 = vmatprep.subr.mxu0 0.0
    %1466 = vmatpush1.msra.mxu0 0.0
    %1467 = vmatprep.subr.mxu0 0.0
    %1468 = vmatpush1.msra.mxu0 0.0
    %1469 = vmatprep.subr.mxu0 0.0
    %1470 = vmatpush1.msra.mxu0 0.0
    %1471 = vmatprep.subr.mxu0 0.0
    %1472 = vmatpush1.msra.mxu0 0.0
    %1473 = vmatprep.subr.mxu0 0.0
    %1474 = vmatpush1.msra.mxu0 0.0
    %1475 = vmatprep.subr.mxu0 0.0
    %1476 = vmatpush1.msra.mxu0 0.0
    %1477 = vmatprep.subr.mxu0 0.0
    %1478 = vmatpush1.msra.mxu0 0.0
    %1479 = vmatprep.subr.mxu0 0.0
    %1480 = vmatpush1.msra.mxu0 0.0
    %1481 = vmatprep.mubr.f32.mxu0 0.0
    %1482 = vmatmul.mubr.f32.gmra.mrb[0].mxu0 %v1412
    %v1483 = vpop.f32.mrb[0].mxu0
    %v1484 = vadd.f32 %v1409, %v1483
    %v1485 = vpop.f32.mrb[0].mxu0
    %1486 = vmatprep.mubr.f32.mxu0 0.0
    %1487 = vmatmul.mubr.f32.gmra.mrb[0].mxu0 %v1415
    %v1488 = vpop.f32.mrb[0].mxu0
    %v1489 = vadd.f32 %v1409, %v1488
    %v1490 = vpop.f32.mrb[0].mxu0
    %1491 = vdwg.mxu0
    %v1492 = vtanh.pop %v1484
    %v1493 = vtanh.pop %v1489
    %v1494 = vld [vmem:[%s8] sm:$0x1]
    %v1496 = vlaneseq
    %v1497 = vshrl.u32 %v1496, 7
    %v1498 = vsub.s32 0, %v1497
    %v1499 = vrot.slane %v1494, %v1498
    %v1501 = vmul.f32 %v1492, %v1499
    %v1502 = vmul.f32 %v1493, %v1499
    %v1503 = vsel %vm64, %v1501, 0.0
    %1504 = vadd.xlane.f32.xlu0 %v1503
    %v1505 = vpop.xlane.xlu0 %1504
    %v1506 = vsel %vm64, %v1502, 0.0
    %1507 = vadd.xlane.f32.xlu0 %v1506
    %v1508 = vpop.xlane.xlu0 %1507
    %v1509 = vld [vmem:[%s2] sm:$0x3]
    %vm1510 = vcmp.gt.f32.partialorder %v1509, 0.5
    %v1513 = vlaneseq
    %v1514 = vand.u32 %v1513, 127
    %v1515 = vlaneseq
    %v1516 = vshrl.u32 %v1515, 7
    %v1517 = vsub.s32 %v1514, %v1516
    %v1518 = vrot.slane %v1505, %v1517
    %v1519 = vlaneseq
    %v1520 = vshrl.u32 %v1519, 7
    %v1521 = vsub.s32 %v1514, %v1520
    %v1522 = vrot.slane %v1508, %v1521
    %vm1523 = vcmask 1041409
    %v1524 = vsel %vm1523, %v1522, %v1518
    %v1526 = vsel %vm1510, %v1524, -inf
    %vm1527 = vcmask 58368
    %v1528 = vsel %vm1527, %v1526, -inf
    %1529 = vmax.xlane.f32.xlu0 %v1528
    %v1530 = vpop.xlane.xlu0 %1529
    %v1531 = vsub.f32 %v1526, %v1530
    %v1532 = vmul.f32 %v1531, 1.442695
    %v1533 = vpow.pop %v1532
    %v1534 = vsel %vm1527, %v1533, 0.0
    %1535 = vadd.xlane.f32.xlu0 %v1534
    %v1536 = vpop.xlane.xlu0 %1535
    %v1537 = vrcp.pop %v1536
    %v1538 = vmul.f32 %v1533, %v1537
    %1539 = vst.msk [vmem:[#allocation5] sm:$0x3] %vm1527, %v1538
    %v1540 = vlaneseq
    %v1541 = vshrl.u32 %v1540, 7
    %v1542 = vsub.s32 0, %v1541
    %v1543 = vrot.slane %v1538, %v1542
    %1545 = vbcast.lane.b32.xlu0 %v1543, 256
    %v1546 = vpop.permute.xlu0 %1545
    %v1547 = vlaneseq
    %v1548 = vshrl.u32 %v1547, 7
    %v1549 = vsub.s32 1, %v1548
    %v1550 = vrot.slane %v1538, %v1549
    %1552 = vbcast.lane.b32.xlu0 %v1550, 256
    %v1553 = vpop.permute.xlu0 %1552
    %v1554 = vmul.f32 %v1546, %v1394
    %v1555 = vmul.f32 %v1553, %v1395
    %v1556 = vsel %vm166, %v1554, 0.0
    %v1557 = vrot.slane %v1556, 4
    %v1558 = vadd.f32 %v1556, %v1557
    %v1559 = vrot.slane %v1558, 2
    %v1560 = vadd.f32 %v1558, %v1559
    %v1561 = vrot.slane %v1560, 1
    %v1562 = vadd.f32 %v1560, %v1561
    %v1563 = vsel %vm166, %v1555, 0.0
    %v1564 = vrot.slane %v1563, 4
    %v1565 = vadd.f32 %v1563, %v1564
    %v1566 = vrot.slane %v1565, 2
    %v1567 = vadd.f32 %v1565, %v1566
    %v1568 = vrot.slane %v1567, 1
    %v1569 = vadd.f32 %v1567, %v1568
    %v1570 = vld [vmem:[%s9] sm:$0xff]
    %v1571 = vld [vmem:[%s9 + $0x8] sm:$0xff]
    %v1572 = vld [vmem:[%s9 + $0x10] sm:$0xff]
    %v1573 = vld [vmem:[%s9 + $0x18] sm:$0xff]
    %v1574 = vld [vmem:[%s9 + $0x20] sm:$0xff]
    %v1575 = vld [vmem:[%s9 + $0x28] sm:$0xff]
    %v1576 = vld [vmem:[%s9 + $0x30] sm:$0xff]
    %v1577 = vld [vmem:[%s9 + $0x38] sm:$0xff]
    %v1578 = vld [vmem:[%s10] sm:$0x1]
    %v1580 = vlaneseq
    %v1581 = vshrl.u32 %v1580, 7
    %v1582 = vsub.s32 0, %v1581
    %v1583 = vrot.slane %v1578, %v1582
    %v1587 = vsel %vm1523, %v1569, %v1562
    %v1588 = vsel %vm166, %v1587, 0
    %1590 = vmatprep.subr.mxu0 0.0
    %1591 = vmatpush1.msra.mxu0 %v1570
    %1592 = vmatprep.subr.mxu0 0.0
    %1593 = vmatpush1.msra.mxu0 %v1571
    %1594 = vmatprep.subr.mxu0 0.0
    %1595 = vmatpush1.msra.mxu0 %v1572
    %1596 = vmatprep.subr.mxu0 0.0
    %1597 = vmatpush1.msra.mxu0 %v1573
    %1598 = vmatprep.subr.mxu0 0.0
    %1599 = vmatpush1.msra.mxu0 %v1574
    %1600 = vmatprep.subr.mxu0 0.0
    %1601 = vmatpush1.msra.mxu0 %v1575
    %1602 = vmatprep.subr.mxu0 0.0
    %1603 = vmatpush1.msra.mxu0 %v1576
    %1604 = vmatprep.subr.mxu0 0.0
    %1605 = vmatpush1.msra.mxu0 %v1577
    %1606 = vmatprep.subr.mxu0 0.0
    %1607 = vmatpush1.msra.mxu0 0.0
    %1608 = vmatprep.subr.mxu0 0.0
    %1609 = vmatpush1.msra.mxu0 0.0
    %1610 = vmatprep.subr.mxu0 0.0
    %1611 = vmatpush1.msra.mxu0 0.0
    %1612 = vmatprep.subr.mxu0 0.0
    %1613 = vmatpush1.msra.mxu0 0.0
    %1614 = vmatprep.subr.mxu0 0.0
    %1615 = vmatpush1.msra.mxu0 0.0
    %1616 = vmatprep.subr.mxu0 0.0
    %1617 = vmatpush1.msra.mxu0 0.0
    %1618 = vmatprep.subr.mxu0 0.0
    %1619 = vmatpush1.msra.mxu0 0.0
    %1620 = vmatprep.subr.mxu0 0.0
    %1621 = vmatpush1.msra.mxu0 0.0
    %1622 = vmatprep.subr.mxu0 0.0
    %1623 = vmatpush1.msra.mxu0 0.0
    %1624 = vmatprep.subr.mxu0 0.0
    %1625 = vmatpush1.msra.mxu0 0.0
    %1626 = vmatprep.subr.mxu0 0.0
    %1627 = vmatpush1.msra.mxu0 0.0
    %1628 = vmatprep.subr.mxu0 0.0
    %1629 = vmatpush1.msra.mxu0 0.0
    %1630 = vmatprep.subr.mxu0 0.0
    %1631 = vmatpush1.msra.mxu0 0.0
    %1632 = vmatprep.subr.mxu0 0.0
    %1633 = vmatpush1.msra.mxu0 0.0
    %1634 = vmatprep.subr.mxu0 0.0
    %1635 = vmatpush1.msra.mxu0 0.0
    %1636 = vmatprep.subr.mxu0 0.0
    %1637 = vmatpush1.msra.mxu0 0.0
    %1638 = vmatprep.subr.mxu0 0.0
    %1639 = vmatpush1.msra.mxu0 0.0
    %1640 = vmatprep.subr.mxu0 0.0
    %1641 = vmatpush1.msra.mxu0 0.0
    %1642 = vmatprep.subr.mxu0 0.0
    %1643 = vmatpush1.msra.mxu0 0.0
    %1644 = vmatprep.subr.mxu0 0.0
    %1645 = vmatpush1.msra.mxu0 0.0
    %1646 = vmatprep.subr.mxu0 0.0
    %1647 = vmatpush1.msra.mxu0 0.0
    %1648 = vmatprep.subr.mxu0 0.0
    %1649 = vmatpush1.msra.mxu0 0.0
    %1650 = vmatprep.subr.mxu0 0.0
    %1651 = vmatpush1.msra.mxu0 0.0
    %1652 = vmatprep.subr.mxu0 0.0
    %1653 = vmatpush1.msra.mxu0 0.0
    %1654 = vmatprep.mubr.f32.mxu0 0.0
    %1655 = vmatmul.mubr.f32.gmra.mrb[0].mxu0 %v1588
    %v1656 = vpop.f32.mrb[0].mxu0
    %v1657 = vadd.f32 %v1583, %v1656
    %v1658 = vpop.f32.mrb[0].mxu0
    %1659 = vdwg.mxu0
    %vm1660 = vcmask 9216
    %1661 = vst.msk [vmem:[#allocation3] sm:$0x3] %vm1660, %v1657
    // Predicated region
    $region46: #{attention_lstm_forward.1} parent=1 // pred_check
      _
    $region47: #{attention_lstm_forward.1} parent=1 // pred_check_branch
      %1663 = sbr.rel (0) target = $region49
    $region48: #{attention_lstm_forward.1} parent=1 // pred_region
      %s1665 = ssub.s32 32, 32
      %1666 = vsyncadd [#allocation4], %s1665
      %s1668 = sshll.u32 [#allocation3], 4
      %s1669 = int_to_ptr.vmem [resolvable:$true] %s1668
      %1671 = dma.vmem_to_hbm [thread:$0]  %s1669, 32, %s11, [#allocation4]
    $region49: #{attention_lstm_forward.1} parent=1 // pred_fallthru
      _
    // Predicated region
    $region50: #{attention_lstm_forward.1} parent=1 // pred_check
      _
    $region51: #{attention_lstm_forward.1} parent=1 // pred_check_branch
      %1673 = sbr.rel (0) target = $region53
    $region52: #{attention_lstm_forward.1} parent=1 // pred_region
      %s1675 = ssub.s32 32, 32
      %1676 = vsyncadd [#allocation6], %s1675
      %s1678 = sshll.u32 [#allocation5], 4
      %s1679 = int_to_ptr.vmem [resolvable:$true] %s1678
      %1681 = dma.vmem_to_hbm [thread:$0]  %s1679, 32, %s12, [#allocation6]
    $region53: #{attention_lstm_forward.1} parent=1 // pred_fallthru
      _
    // Predicated region
    $region54: #{attention_lstm_forward.1} parent=1 // pred_check
      _
    $region55: #{attention_lstm_forward.1} parent=1 // pred_check_branch
      %1683 = sbr.rel (0) target = $region57
    $region56: #{attention_lstm_forward.1} parent=1 // pred_region
      %1684 = dma.done [#allocation4], 32
    $region57: #{attention_lstm_forward.1} parent=1 // pred_fallthru
      _
    // Predicated region
    $region58: #{attention_lstm_forward.1} parent=1 // pred_check
      _
    $region59: #{attention_lstm_forward.1} parent=1 // pred_check_branch
      %1686 = sbr.rel (0) target = $region61
    $region60: #{attention_lstm_forward.1} parent=1 // pred_region
      %1687 = dma.done [#allocation6], 32
    $region61: #{attention_lstm_forward.1} parent=1 // pred_fallthru
      _
    %1688 = vsyncpa [#allocation4], 1
    %1689 = vsyncpa [#allocation6], 1

</llo_original>
